<compile_context>
chip_gen: v7x
topology: tpu7x:2x2x1
jax: 0.10.0
libtpu: 0.0.40
codegen_flags: <defaults>
</compile_context>

<pallas_src>
import jax
import jax.numpy as jnp
from jax.experimental import pallas as pl
from jax.experimental.pallas import tpu as pltpu

_LANE = 128
_SUB = 8


def _round_up(x, m):
    return ((x + m - 1) // m) * m


def _pad2(a, rows, cols):
    a = jnp.asarray(a, jnp.float32)
    if a.ndim == 1:
        a = a.reshape(1, -1)
    r, c = a.shape
    return jnp.pad(a, ((0, rows - r), (0, cols - c)))


def _block_diag2(a):
    """blockdiag(a, a) — used to batch two independent graphs in one matmul."""
    z = jnp.zeros_like(a)
    top = jnp.concatenate([a, z], axis=1)
    bot = jnp.concatenate([z, a], axis=1)
    return jnp.concatenate([top, bot], axis=0)


# ----------------------------------------------------------------------------
# Fused forward-pass kernel (single pallas_call, everything resident in VMEM)
# ----------------------------------------------------------------------------
def _make_fused_kernel(dims, w_offs, num_steps):
    n8, p8, fp, hp, lp = dims
    o_ew1, o_ew2, o_dw1, o_dw2, o_ow = w_offs
    p2 = 2 * p8
    bf16 = jnp.bfloat16

    def mm(a, b):
        # bf16 MXU operands, f32 accumulation (matches TPU default precision)
        return jnp.dot(a.astype(bf16), b.astype(bf16),
                       preferred_element_type=jnp.float32)

    def kernel(dt_ref, x_ref, w_ref, b_ref,
               adj2_ref, adjp2_ref, s2_ref, st2_ref,
               xrec_ref, z_ref):
        # ---- packed bf16 weight slab: static, tile-aligned row slices ----
        ew1 = w_ref[o_ew1:o_ew1 + fp, 0:hp]
        ew2 = w_ref[o_ew2:o_ew2 + hp, 0:lp]
        dw1 = w_ref[o_dw1:o_dw1 + lp, 0:hp]
        dw2 = w_ref[o_dw2:o_dw2 + hp, 0:fp]
        ow = w_ref[o_ow:o_ow + lp, 0:lp]

        # ---- packed f32 bias slab: one bias per 8-row block (sublane 0) ----
        eb1 = b_ref[0:1, 0:hp]
        eb2 = b_ref[8:9, 0:lp]
        db1 = b_ref[16:17, 0:hp]
        db2 = b_ref[24:25, 0:fp]
        ob = b_ref[32:33, 0:lp]

        # ---- graph structure (f32, cast to bf16 at the dot inputs) ----
        adj2 = adj2_ref[...]              # [2n8, 2n8]  blockdiag(A, A)
        adjp2 = adjp2_ref[...]            # [2p8, 2p8]  blockdiag(A_pool, A_pool)
        s2 = s2_ref[...]                  # [2n8, 2p8]  blockdiag(S, S)
        st2 = st2_ref[...]                # [2p8, 2n8]  blockdiag(S^T, S^T)
        adjp = adjp2_ref[0:p8, 0:p8]      # single-graph A_pool (top-left block)

        # ---- encoder: t0 and t1 graphs batched along node/sublane axis ----
        x = x_ref[...]                                       # bf16 [2n8, fp]
        h = jnp.maximum(mm(adj2, mm(x, ew1)) + eb1, 0.0)     # GCN-1 (relu)
        h_pool = mm(st2, h)                                  # pooling  S^T @ h
        z_enc = mm(adjp2, mm(h_pool, ew2)) + eb2             # GCN-2     [2p8, lp]
        z_t0 = z_enc[0:p8, :]
        z_t1_real = z_enc[p8:p2, :]

        # ---- NeuralODE on pooled latent graph: fully-unrolled Euler ----
        dt = dt_ref[0]                                       # scalar from SMEM
        ob_b = jnp.broadcast_to(ob, (p8, lp))                # hoisted out of loop
        z = z_t0
        for _ in range(num_steps):                           # compile-time constant
            f = jnp.tanh(mm(adjp, mm(z, ow)) + ob_b)
            z = z + dt * f
        z_pred = z

        # ---- decoder: z_t0 and z_t1_pred batched along node/sublane axis ----
        z_stack = jnp.concatenate([z_t0, z_pred], axis=0)    # [2p8, lp]
        z_up = mm(s2, z_stack)                               # unpool  S @ z
        hd = jnp.maximum(mm(adj2, mm(z_up, dw1)) + db1, 0.0)
        x_rec = mm(adj2, mm(hd, dw2)) + db2                  # [2n8, fp]

        # ---- merged, lane-dense outputs ----
        xrec_ref[...] = x_rec                                # rows 0:n8 = t0 rec, n8: = t1 pred rec
        z_ref[0:p8, :] = z_t0
        z_ref[p8:2 * p8, :] = z_pred
        z_ref[2 * p8:3 * p8, :] = z_t1_real

    return kernel


# ----------------------------------------------------------------------------
# Build-time packing (runs once) + thin per-call jitted wrapper
# ----------------------------------------------------------------------------
def build_combined_model_forward(params, adj, s_assign, *, ode_steps=8):
    adj = jnp.asarray(adj, jnp.float32)
    s_assign = jnp.asarray(s_assign, jnp.float32)
    n, p = s_assign.shape
    f_in, hidden = params["enc_w1"].shape
    latent = params["enc_w2"].shape[1]

    n8 = _round_up(n, _SUB)
    p8 = _round_up(p, _SUB)
    fp = _round_up(f_in, _LANE)
    hp = _round_up(hidden, _LANE)
    lp = _round_up(latent, _LANE)
    width = max(fp, hp, lp)

    # ---- one-time graph-structure setup (plain jnp, eager, constant) ----
    adj_pool = s_assign.T @ adj @ s_assign
    adj2 = _block_diag2(_pad2(adj, n8, n8))          # [2n8, 2n8]
    adjp2 = _block_diag2(_pad2(adj_pool, p8, p8))    # [2p8, 2p8]
    s2 = _block_diag2(_pad2(s_assign, n8, p8))       # [2n8, 2p8]
    st2 = s2.T                                       # [2p8, 2n8]

    # ---- one-time weight packing: bf16 weight slab + f32 bias slab ----
    w_entries = [
        _pad2(params["enc_w1"], fp, width),
        _pad2(params["enc_w2"], hp, width),
        _pad2(params["dec_w1"], lp, width),
        _pad2(params["dec_w2"], hp, width),
        _pad2(params["ode_w"], lp, width),
    ]
    w_offs = []
    off = 0
    for e in w_entries:
        w_offs.append(off)
        off += e.shape[0]
    w_slab = jnp.concatenate(w_entries, axis=0).astype(jnp.bfloat16)

    b_slab = jnp.concatenate(
        [
            _pad2(params["enc_b1"], _SUB, width),
            _pad2(params["enc_b2"], _SUB, width),
            _pad2(params["dec_b1"], _SUB, width),
            _pad2(params["dec_b2"], _SUB, width),
            _pad2(params["ode_b"], _SUB, width),
        ],
        axis=0,
    )  # f32 [40, width]

    dims = (n8, p8, fp, hp, lp)
    kernel = _make_fused_kernel(dims, tuple(w_offs), int(ode_steps))

    vmem = pl.BlockSpec(memory_space=pltpu.MemorySpace.VMEM)
    smem = pl.BlockSpec(memory_space=pltpu.MemorySpace.SMEM)

    fused = pl.pallas_call(
        kernel,
        out_shape=(
            jax.ShapeDtypeStruct((2 * n8, fp), jnp.float32),  # [x_t0_rec ; x_t1_pred_rec]
            jax.ShapeDtypeStruct((3 * p8, lp), jnp.float32),  # [z_t0 ; z_t1_pred ; z_t1_real]
        ),
        in_specs=[smem] + [vmem] * 7,
        out_specs=(vmem, vmem),
    )

    inv_steps = 1.0 / float(ode_steps)

    @jax.jit
    def _forward_arrays(data_t0, data_t1, t0_scalar, t1_scalar):
        dt = (jnp.asarray(t1_scalar, jnp.float32)
              - jnp.asarray(t0_scalar, jnp.float32)) * jnp.float32(inv_steps)
        dt = dt.reshape((1,))
        x0 = _pad2(data_t0, n8, fp)
        x1 = _pad2(data_t1, n8, fp)
        x_stack = jnp.concatenate([x0, x1], axis=0).astype(jnp.bfloat16)
        xrec, zout = fused(dt, x_stack, w_slab, b_slab, adj2, adjp2, s2, st2)
        return (
            xrec[0:n, 0:f_in],                    # x_t0_reconstructed
            xrec[n8:n8 + n, 0:f_in],              # x_t1_predicted_reconstructed
            zout[0:p, 0:latent],                  # z_t0_nodes
            zout[p8:p8 + p, 0:latent],            # z_t1_predicted_nodes
            zout[2 * p8:2 * p8 + p, 0:latent],    # z_t1_real_nodes
        )

    zeros_x = jnp.zeros((n, f_in), jnp.float32)

    def forward(data_t0, t0_scalar, t1_scalar, data_t1=None,
                return_latent_t1_real=False):
        include_t1 = bool(return_latent_t1_real) and (data_t1 is not None)
        x1 = data_t1 if data_t1 is not None else zeros_x
        x0_rec, x1_rec, z_t0, z_t1_pred, z_t1_real = _forward_arrays(
            data_t0, x1, t0_scalar, t1_scalar)
        z_batch = jnp.zeros((p,), jnp.int32)  # single graph
        outputs = {
            "x_t0_reconstructed": x0_rec,
            "z_t0_nodes": z_t0,
            "z_t0_batch": z_batch,
            "z_t1_predicted_nodes": z_t1_pred,
            "x_t1_predicted_reconstructed": x1_rec,
            "pooling_details_t0": [
                {"edge_index_after_pool": adj_pool, "assignment": s_assign}
            ],
        }
        if include_t1:
            outputs["z_t1_real_nodes"] = z_t1_real
            outputs["z_t1_real_batch"] = z_batch
        return outputs

    return forward


# ----------------------------------------------------------------------------
# Deterministic model setup
# ----------------------------------------------------------------------------
def build_graph(num_nodes):
    """Ring graph + self loops, symmetrically normalized adjacency."""
    adj = jnp.zeros((num_nodes, num_nodes), jnp.float32)
    idx = jnp.arange(num_nodes)
    adj = adj.at[idx, (idx + 1) % num_nodes].set(1.0)
    adj = adj.at[(idx + 1) % num_nodes, idx].set(1.0)
    adj = adj + jnp.eye(num_nodes, dtype=jnp.float32)
    deg = jnp.sum(adj, axis=1)
    d_inv_sqrt = 1.0 / jnp.sqrt(deg)
    return adj * d_inv_sqrt[:, None] * d_inv_sqrt[None, :]


def build_pooling(num_nodes, num_pooled):
    """Fixed block-average assignment matrix S: [num_nodes, num_pooled]."""
    ratio = num_nodes // num_pooled
    s = jnp.zeros((num_nodes, num_pooled), jnp.float32)
    for pp in range(num_pooled):
        for r in range(ratio):
            s = s.at[pp * ratio + r, pp].set(1.0 / ratio)
    return s


def init_params(key, f_in, hidden, latent):
    ks = jax.random.split(key, 7)
    scale = 0.2

    def w(k, shape):
        return scale * jax.random.normal(k, shape, jnp.float32)

    return {
        "enc_w1": w(ks[0], (f_in, hidden)),
        "enc_b1": jnp.zeros((1, hidden), jnp.float32),
        "enc_w2": w(ks[1], (hidden, latent)),
        "enc_b2": jnp.zeros((1, latent), jnp.float32),
        "dec_w1": w(ks[2], (latent, hidden)),
        "dec_b1": jnp.zeros((1, hidden), jnp.float32),
        "dec_w2": w(ks[3], (hidden, f_in)),
        "dec_b2": jnp.zeros((1, f_in), jnp.float32),
        "ode_w": w(ks[4], (latent, latent)),
        "ode_b": jnp.zeros((1, latent), jnp.float32),
    }


# ----------------------------------------------------------------------------
# Driver
# ----------------------------------------------------------------------------
if __name__ == "__main__":
    NUM_NODES = 16   # nodes in the input graph
    NUM_POOLED = 8   # nodes after pooling (ratio 2)
    F_IN = 8         # input node features
    HIDDEN = 32      # hidden GCN width
    LATENT = 8       # latent_dim from model_config.model_params.latent_dim

    key = jax.random.PRNGKey(0)
    k_param, k_x0, k_x1 = jax.random.split(key, 3)

    params = init_params(k_param, F_IN, HIDDEN, LATENT)
    adj = build_graph(NUM_NODES)                      # [16, 16] normalized adjacency
    s_assign = build_pooling(NUM_NODES, NUM_POOLED)   # [16, 8] pooling assignment

    # One-time build: padding, slab packing, block-diag graph setup, jit wrapper.
    forward = build_combined_model_forward(params, adj, s_assign, ode_steps=8)

    data_t0 = jax.random.normal(k_x0, (NUM_NODES, F_IN), jnp.float32)
    data_t1 = jax.random.normal(k_x1, (NUM_NODES, F_IN), jnp.float32)
    t0_scalar = jnp.float32(0.0)
    t1_scalar = jnp.float32(1.0)

    outputs = forward(
        data_t0, t0_scalar, t1_scalar,
        data_t1=data_t1, return_latent_t1_real=True,
    )

    jax.block_until_ready(
        [
            outputs["x_t0_reconstructed"],
            outputs["z_t0_nodes"],
            outputs["z_t0_batch"],
            outputs["z_t1_predicted_nodes"],
            outputs["x_t1_predicted_reconstructed"],
            outputs["z_t1_real_nodes"],
            outputs["z_t1_real_batch"],
        ]
    )

    # shape + finiteness sanity
    assert outputs["x_t0_reconstructed"].shape == (NUM_NODES, F_IN)
    assert outputs["z_t0_nodes"].shape == (NUM_POOLED, LATENT)
    assert outputs["z_t1_predicted_nodes"].shape == (NUM_POOLED, LATENT)
    assert outputs["x_t1_predicted_reconstructed"].shape == (NUM_NODES, F_IN)
    assert outputs["z_t1_real_nodes"].shape == (NUM_POOLED, LATENT)
    for k in ("x_t0_reconstructed", "z_t0_nodes", "z_t1_predicted_nodes",
              "x_t1_predicted_reconstructed", "z_t1_real_nodes"):
        assert bool(jnp.all(jnp.isfinite(outputs[k]))), f"non-finite values in {k}"

    print("KERNEL_OK")
</pallas_src>

<mosaic_0001>
module attributes {stable_mosaic.version = 11 : i64} {
  func.func @kernel(%arg0: memref<1xf32, #tpu.memory_space<smem>>, %arg1: memref<32x128xbf16, #tpu.memory_space<vmem>>, %arg2: memref<640x128xbf16, #tpu.memory_space<vmem>>, %arg3: memref<40x128xf32, #tpu.memory_space<vmem>>, %arg4: memref<32x32xf32, #tpu.memory_space<vmem>>, %arg5: memref<16x16xf32, #tpu.memory_space<vmem>>, %arg6: memref<32x16xf32, #tpu.memory_space<vmem>>, %arg7: memref<16x32xf32, #tpu.memory_space<vmem>>, %arg8: memref<32x128xf32, #tpu.memory_space<vmem>>, %arg9: memref<24x128xf32, #tpu.memory_space<vmem>>) attributes {dimension_semantics = [], scalar_prefetch = 0 : i64, scratch_operands = 0 : i64, tpu.core_type = #tpu.core_type<tc>} {
    %c0 = arith.constant 0 : index
    %c0_0 = arith.constant 0 : index
    %0 = vector.load %arg2[%c0, %c0_0] : memref<640x128xbf16, #tpu.memory_space<vmem>>, vector<128x128xbf16>
    %c128 = arith.constant 128 : index
    %c0_1 = arith.constant 0 : index
    %1 = vector.load %arg2[%c128, %c0_1] : memref<640x128xbf16, #tpu.memory_space<vmem>>, vector<128x128xbf16>
    %c256 = arith.constant 256 : index
    %c0_2 = arith.constant 0 : index
    %2 = vector.load %arg2[%c256, %c0_2] : memref<640x128xbf16, #tpu.memory_space<vmem>>, vector<128x128xbf16>
    %c384 = arith.constant 384 : index
    %c0_3 = arith.constant 0 : index
    %3 = vector.load %arg2[%c384, %c0_3] : memref<640x128xbf16, #tpu.memory_space<vmem>>, vector<128x128xbf16>
    %c512 = arith.constant 512 : index
    %c0_4 = arith.constant 0 : index
    %4 = vector.load %arg2[%c512, %c0_4] : memref<640x128xbf16, #tpu.memory_space<vmem>>, vector<128x128xbf16>
    %c0_5 = arith.constant 0 : index
    %c0_6 = arith.constant 0 : index
    %5 = vector.load %arg3[%c0_5, %c0_6] : memref<40x128xf32, #tpu.memory_space<vmem>>, vector<1x128xf32>
    %c8 = arith.constant 8 : index
    %c0_7 = arith.constant 0 : index
    %6 = vector.load %arg3[%c8, %c0_7] : memref<40x128xf32, #tpu.memory_space<vmem>>, vector<1x128xf32>
    %c16 = arith.constant 16 : index
    %c0_8 = arith.constant 0 : index
    %7 = vector.load %arg3[%c16, %c0_8] : memref<40x128xf32, #tpu.memory_space<vmem>>, vector<1x128xf32>
    %c24 = arith.constant 24 : index
    %c0_9 = arith.constant 0 : index
    %8 = vector.load %arg3[%c24, %c0_9] : memref<40x128xf32, #tpu.memory_space<vmem>>, vector<1x128xf32>
    %c32 = arith.constant 32 : index
    %c0_10 = arith.constant 0 : index
    %9 = vector.load %arg3[%c32, %c0_10] : memref<40x128xf32, #tpu.memory_space<vmem>>, vector<1x128xf32>
    %c0_11 = arith.constant 0 : index
    %c0_12 = arith.constant 0 : index
    %10 = vector.load %arg4[%c0_11, %c0_12] : memref<32x32xf32, #tpu.memory_space<vmem>>, vector<32x32xf32>
    %c0_13 = arith.constant 0 : index
    %c0_14 = arith.constant 0 : index
    %11 = vector.load %arg5[%c0_13, %c0_14] : memref<16x16xf32, #tpu.memory_space<vmem>>, vector<16x16xf32>
    %c0_15 = arith.constant 0 : index
    %c0_16 = arith.constant 0 : index
    %12 = vector.load %arg6[%c0_15, %c0_16] : memref<32x16xf32, #tpu.memory_space<vmem>>, vector<32x16xf32>
    %c0_17 = arith.constant 0 : index
    %c0_18 = arith.constant 0 : index
    %13 = vector.load %arg7[%c0_17, %c0_18] : memref<16x32xf32, #tpu.memory_space<vmem>>, vector<16x32xf32>
    %c0_19 = arith.constant 0 : index
    %c0_20 = arith.constant 0 : index
    %14 = vector.load %arg5[%c0_19, %c0_20] : memref<16x16xf32, #tpu.memory_space<vmem>>, vector<8x8xf32>
    %c0_21 = arith.constant 0 : index
    %c0_22 = arith.constant 0 : index
    %15 = vector.load %arg1[%c0_21, %c0_22] : memref<32x128xbf16, #tpu.memory_space<vmem>>, vector<32x128xbf16>
    %cst = arith.constant dense<0.000000e+00> : vector<32x128xf32>
    %16 = tpu.matmul %15, %0, %cst {dimension_numbers = #tpu.dot_dimension_numbers<[1], [0], [0], [1], [0, 0, 1, 1], [], []>} : vector<32x128xbf16>, vector<128x128xbf16>, vector<32x128xf32> -> vector<32x128xf32>
    %17 = arith.truncf %10 : vector<32x32xf32> to vector<32x32xbf16>
    %18 = arith.truncf %16 : vector<32x128xf32> to vector<32x128xbf16>
    %cst_23 = arith.constant dense<0.000000e+00> : vector<32x128xf32>
    %19 = tpu.matmul %17, %18, %cst_23 {dimension_numbers = #tpu.dot_dimension_numbers<[1], [0], [0], [1], [0, 0, 1, 1], [], []>} : vector<32x32xbf16>, vector<32x128xbf16>, vector<32x128xf32> -> vector<32x128xf32>
    %20 = vector.broadcast %5 : vector<1x128xf32> to vector<32x128xf32>
    %21 = arith.addf %19, %20 : vector<32x128xf32>
    %cst_24 = arith.constant 0.000000e+00 : f32
    %22 = vector.broadcast %cst_24 : f32 to vector<32x128xf32>
    %23 = arith.maximumf %21, %22 : vector<32x128xf32>
    %24 = arith.truncf %13 : vector<16x32xf32> to vector<16x32xbf16>
    %25 = arith.truncf %23 : vector<32x128xf32> to vector<32x128xbf16>
    %cst_25 = arith.constant dense<0.000000e+00> : vector<16x128xf32>
    %26 = tpu.matmul %24, %25, %cst_25 {dimension_numbers = #tpu.dot_dimension_numbers<[1], [0], [0], [1], [0, 0, 1, 1], [], []>} : vector<16x32xbf16>, vector<32x128xbf16>, vector<16x128xf32> -> vector<16x128xf32>
    %27 = arith.truncf %26 : vector<16x128xf32> to vector<16x128xbf16>
    %cst_26 = arith.constant dense<0.000000e+00> : vector<16x128xf32>
    %28 = tpu.matmul %27, %1, %cst_26 {dimension_numbers = #tpu.dot_dimension_numbers<[1], [0], [0], [1], [0, 0, 1, 1], [], []>} : vector<16x128xbf16>, vector<128x128xbf16>, vector<16x128xf32> -> vector<16x128xf32>
    %29 = arith.truncf %11 : vector<16x16xf32> to vector<16x16xbf16>
    %30 = arith.truncf %28 : vector<16x128xf32> to vector<16x128xbf16>
    %cst_27 = arith.constant dense<0.000000e+00> : vector<16x128xf32>
    %31 = tpu.matmul %29, %30, %cst_27 {dimension_numbers = #tpu.dot_dimension_numbers<[1], [0], [0], [1], [0, 0, 1, 1], [], []>} : vector<16x16xbf16>, vector<16x128xbf16>, vector<16x128xf32> -> vector<16x128xf32>
    %32 = vector.broadcast %6 : vector<1x128xf32> to vector<16x128xf32>
    %33 = arith.addf %31, %32 : vector<16x128xf32>
    %34 = vector.extract_strided_slice %33 {offsets = [0, 0], sizes = [8, 128], strides = [1, 1]} : vector<16x128xf32> to vector<8x128xf32>
    %35 = vector.extract_strided_slice %33 {offsets = [8, 0], sizes = [8, 128], strides = [1, 1]} : vector<16x128xf32> to vector<8x128xf32>
    %c0_28 = arith.constant 0 : index
    %36 = memref.load %arg0[%c0_28] : memref<1xf32, #tpu.memory_space<smem>>
    %37 = vector.shape_cast %9 : vector<1x128xf32> to vector<1x128xf32>
    %38 = vector.broadcast %37 : vector<1x128xf32> to vector<8x128xf32>
    %39 = arith.truncf %34 : vector<8x128xf32> to vector<8x128xbf16>
    %cst_29 = arith.constant dense<0.000000e+00> : vector<8x128xf32>
    %40 = tpu.matmul %39, %4, %cst_29 {dimension_numbers = #tpu.dot_dimension_numbers<[1], [0], [0], [1], [0, 0, 1, 1], [], []>} : vector<8x128xbf16>, vector<128x128xbf16>, vector<8x128xf32> -> vector<8x128xf32>
    %41 = arith.truncf %14 : vector<8x8xf32> to vector<8x8xbf16>
    %42 = arith.truncf %40 : vector<8x128xf32> to vector<8x128xbf16>
    %cst_30 = arith.constant dense<0.000000e+00> : vector<8x128xf32>
    %43 = tpu.matmul %41, %42, %cst_30 {dimension_numbers = #tpu.dot_dimension_numbers<[1], [0], [0], [1], [0, 0, 1, 1], [], []>} : vector<8x8xbf16>, vector<8x128xbf16>, vector<8x128xf32> -> vector<8x128xf32>
    %44 = arith.addf %43, %38 : vector<8x128xf32>
    %45 = math.tanh %44 : vector<8x128xf32>
    %46 = vector.broadcast %36 : f32 to vector<8x128xf32>
    %47 = arith.mulf %46, %45 : vector<8x128xf32>
    %48 = arith.addf %34, %47 : vector<8x128xf32>
    %49 = arith.truncf %48 : vector<8x128xf32> to vector<8x128xbf16>
    %cst_31 = arith.constant dense<0.000000e+00> : vector<8x128xf32>
    %50 = tpu.matmul %49, %4, %cst_31 {dimension_numbers = #tpu.dot_dimension_numbers<[1], [0], [0], [1], [0, 0, 1, 1], [], []>} : vector<8x128xbf16>, vector<128x128xbf16>, vector<8x128xf32> -> vector<8x128xf32>
    %51 = arith.truncf %14 : vector<8x8xf32> to vector<8x8xbf16>
    %52 = arith.truncf %50 : vector<8x128xf32> to vector<8x128xbf16>
    %cst_32 = arith.constant dense<0.000000e+00> : vector<8x128xf32>
    %53 = tpu.matmul %51, %52, %cst_32 {dimension_numbers = #tpu.dot_dimension_numbers<[1], [0], [0], [1], [0, 0, 1, 1], [], []>} : vector<8x8xbf16>, vector<8x128xbf16>, vector<8x128xf32> -> vector<8x128xf32>
    %54 = arith.addf %53, %38 : vector<8x128xf32>
    %55 = math.tanh %54 : vector<8x128xf32>
    %56 = vector.broadcast %36 : f32 to vector<8x128xf32>
    %57 = arith.mulf %56, %55 : vector<8x128xf32>
    %58 = arith.addf %48, %57 : vector<8x128xf32>
    %59 = arith.truncf %58 : vector<8x128xf32> to vector<8x128xbf16>
    %cst_33 = arith.constant dense<0.000000e+00> : vector<8x128xf32>
    %60 = tpu.matmul %59, %4, %cst_33 {dimension_numbers = #tpu.dot_dimension_numbers<[1], [0], [0], [1], [0, 0, 1, 1], [], []>} : vector<8x128xbf16>, vector<128x128xbf16>, vector<8x128xf32> -> vector<8x128xf32>
    %61 = arith.truncf %14 : vector<8x8xf32> to vector<8x8xbf16>
    %62 = arith.truncf %60 : vector<8x128xf32> to vector<8x128xbf16>
    %cst_34 = arith.constant dense<0.000000e+00> : vector<8x128xf32>
    %63 = tpu.matmul %61, %62, %cst_34 {dimension_numbers = #tpu.dot_dimension_numbers<[1], [0], [0], [1], [0, 0, 1, 1], [], []>} : vector<8x8xbf16>, vector<8x128xbf16>, vector<8x128xf32> -> vector<8x128xf32>
    %64 = arith.addf %63, %38 : vector<8x128xf32>
    %65 = math.tanh %64 : vector<8x128xf32>
    %66 = vector.broadcast %36 : f32 to vector<8x128xf32>
    %67 = arith.mulf %66, %65 : vector<8x128xf32>
    %68 = arith.addf %58, %67 : vector<8x128xf32>
    %69 = arith.truncf %68 : vector<8x128xf32> to vector<8x128xbf16>
    %cst_35 = arith.constant dense<0.000000e+00> : vector<8x128xf32>
    %70 = tpu.matmul %69, %4, %cst_35 {dimension_numbers = #tpu.dot_dimension_numbers<[1], [0], [0], [1], [0, 0, 1, 1], [], []>} : vector<8x128xbf16>, vector<128x128xbf16>, vector<8x128xf32> -> vector<8x128xf32>
    %71 = arith.truncf %14 : vector<8x8xf32> to vector<8x8xbf16>
    %72 = arith.truncf %70 : vector<8x128xf32> to vector<8x128xbf16>
    %cst_36 = arith.constant dense<0.000000e+00> : vector<8x128xf32>
    %73 = tpu.matmul %71, %72, %cst_36 {dimension_numbers = #tpu.dot_dimension_numbers<[1], [0], [0], [1], [0, 0, 1, 1], [], []>} : vector<8x8xbf16>, vector<8x128xbf16>, vector<8x128xf32> -> vector<8x128xf32>
    %74 = arith.addf %73, %38 : vector<8x128xf32>
    %75 = math.tanh %74 : vector<8x128xf32>
    %76 = vector.broadcast %36 : f32 to vector<8x128xf32>
    %77 = arith.mulf %76, %75 : vector<8x128xf32>
    %78 = arith.addf %68, %77 : vector<8x128xf32>
    %79 = arith.truncf %78 : vector<8x128xf32> to vector<8x128xbf16>
    %cst_37 = arith.constant dense<0.000000e+00> : vector<8x128xf32>
    %80 = tpu.matmul %79, %4, %cst_37 {dimension_numbers = #tpu.dot_dimension_numbers<[1], [0], [0], [1], [0, 0, 1, 1], [], []>} : vector<8x128xbf16>, vector<128x128xbf16>, vector<8x128xf32> -> vector<8x128xf32>
    %81 = arith.truncf %14 : vector<8x8xf32> to vector<8x8xbf16>
    %82 = arith.truncf %80 : vector<8x128xf32> to vector<8x128xbf16>
    %cst_38 = arith.constant dense<0.000000e+00> : vector<8x128xf32>
    %83 = tpu.matmul %81, %82, %cst_38 {dimension_numbers = #tpu.dot_dimension_numbers<[1], [0], [0], [1], [0, 0, 1, 1], [], []>} : vector<8x8xbf16>, vector<8x128xbf16>, vector<8x128xf32> -> vector<8x128xf32>
    %84 = arith.addf %83, %38 : vector<8x128xf32>
    %85 = math.tanh %84 : vector<8x128xf32>
    %86 = vector.broadcast %36 : f32 to vector<8x128xf32>
    %87 = arith.mulf %86, %85 : vector<8x128xf32>
    %88 = arith.addf %78, %87 : vector<8x128xf32>
    %89 = arith.truncf %88 : vector<8x128xf32> to vector<8x128xbf16>
    %cst_39 = arith.constant dense<0.000000e+00> : vector<8x128xf32>
    %90 = tpu.matmul %89, %4, %cst_39 {dimension_numbers = #tpu.dot_dimension_numbers<[1], [0], [0], [1], [0, 0, 1, 1], [], []>} : vector<8x128xbf16>, vector<128x128xbf16>, vector<8x128xf32> -> vector<8x128xf32>
    %91 = arith.truncf %14 : vector<8x8xf32> to vector<8x8xbf16>
    %92 = arith.truncf %90 : vector<8x128xf32> to vector<8x128xbf16>
    %cst_40 = arith.constant dense<0.000000e+00> : vector<8x128xf32>
    %93 = tpu.matmul %91, %92, %cst_40 {dimension_numbers = #tpu.dot_dimension_numbers<[1], [0], [0], [1], [0, 0, 1, 1], [], []>} : vector<8x8xbf16>, vector<8x128xbf16>, vector<8x128xf32> -> vector<8x128xf32>
    %94 = arith.addf %93, %38 : vector<8x128xf32>
    %95 = math.tanh %94 : vector<8x128xf32>
    %96 = vector.broadcast %36 : f32 to vector<8x128xf32>
    %97 = arith.mulf %96, %95 : vector<8x128xf32>
    %98 = arith.addf %88, %97 : vector<8x128xf32>
    %99 = arith.truncf %98 : vector<8x128xf32> to vector<8x128xbf16>
    %cst_41 = arith.constant dense<0.000000e+00> : vector<8x128xf32>
    %100 = tpu.matmul %99, %4, %cst_41 {dimension_numbers = #tpu.dot_dimension_numbers<[1], [0], [0], [1], [0, 0, 1, 1], [], []>} : vector<8x128xbf16>, vector<128x128xbf16>, vector<8x128xf32> -> vector<8x128xf32>
    %101 = arith.truncf %14 : vector<8x8xf32> to vector<8x8xbf16>
    %102 = arith.truncf %100 : vector<8x128xf32> to vector<8x128xbf16>
    %cst_42 = arith.constant dense<0.000000e+00> : vector<8x128xf32>
    %103 = tpu.matmul %101, %102, %cst_42 {dimension_numbers = #tpu.dot_dimension_numbers<[1], [0], [0], [1], [0, 0, 1, 1], [], []>} : vector<8x8xbf16>, vector<8x128xbf16>, vector<8x128xf32> -> vector<8x128xf32>
    %104 = arith.addf %103, %38 : vector<8x128xf32>
    %105 = math.tanh %104 : vector<8x128xf32>
    %106 = vector.broadcast %36 : f32 to vector<8x128xf32>
    %107 = arith.mulf %106, %105 : vector<8x128xf32>
    %108 = arith.addf %98, %107 : vector<8x128xf32>
    %109 = arith.truncf %108 : vector<8x128xf32> to vector<8x128xbf16>
    %cst_43 = arith.constant dense<0.000000e+00> : vector<8x128xf32>
    %110 = tpu.matmul %109, %4, %cst_43 {dimension_numbers = #tpu.dot_dimension_numbers<[1], [0], [0], [1], [0, 0, 1, 1], [], []>} : vector<8x128xbf16>, vector<128x128xbf16>, vector<8x128xf32> -> vector<8x128xf32>
    %111 = arith.truncf %14 : vector<8x8xf32> to vector<8x8xbf16>
    %112 = arith.truncf %110 : vector<8x128xf32> to vector<8x128xbf16>
    %cst_44 = arith.constant dense<0.000000e+00> : vector<8x128xf32>
    %113 = tpu.matmul %111, %112, %cst_44 {dimension_numbers = #tpu.dot_dimension_numbers<[1], [0], [0], [1], [0, 0, 1, 1], [], []>} : vector<8x8xbf16>, vector<8x128xbf16>, vector<8x128xf32> -> vector<8x128xf32>
    %114 = arith.addf %113, %38 : vector<8x128xf32>
    %115 = math.tanh %114 : vector<8x128xf32>
    %116 = vector.broadcast %36 : f32 to vector<8x128xf32>
    %117 = arith.mulf %116, %115 : vector<8x128xf32>
    %118 = arith.addf %108, %117 : vector<8x128xf32>
    %119 = tpu.concatenate %34, %118 in 0 : vector<8x128xf32>, vector<8x128xf32> -> vector<16x128xf32>
    %120 = arith.truncf %12 : vector<32x16xf32> to vector<32x16xbf16>
    %121 = arith.truncf %119 : vector<16x128xf32> to vector<16x128xbf16>
    %cst_45 = arith.constant dense<0.000000e+00> : vector<32x128xf32>
    %122 = tpu.matmul %120, %121, %cst_45 {dimension_numbers = #tpu.dot_dimension_numbers<[1], [0], [0], [1], [0, 0, 1, 1], [], []>} : vector<32x16xbf16>, vector<16x128xbf16>, vector<32x128xf32> -> vector<32x128xf32>
    %123 = arith.truncf %122 : vector<32x128xf32> to vector<32x128xbf16>
    %cst_46 = arith.constant dense<0.000000e+00> : vector<32x128xf32>
    %124 = tpu.matmul %123, %2, %cst_46 {dimension_numbers = #tpu.dot_dimension_numbers<[1], [0], [0], [1], [0, 0, 1, 1], [], []>} : vector<32x128xbf16>, vector<128x128xbf16>, vector<32x128xf32> -> vector<32x128xf32>
    %125 = arith.truncf %10 : vector<32x32xf32> to vector<32x32xbf16>
    %126 = arith.truncf %124 : vector<32x128xf32> to vector<32x128xbf16>
    %cst_47 = arith.constant dense<0.000000e+00> : vector<32x128xf32>
    %127 = tpu.matmul %125, %126, %cst_47 {dimension_numbers = #tpu.dot_dimension_numbers<[1], [0], [0], [1], [0, 0, 1, 1], [], []>} : vector<32x32xbf16>, vector<32x128xbf16>, vector<32x128xf32> -> vector<32x128xf32>
    %128 = vector.broadcast %7 : vector<1x128xf32> to vector<32x128xf32>
    %129 = arith.addf %127, %128 : vector<32x128xf32>
    %cst_48 = arith.constant 0.000000e+00 : f32
    %130 = vector.broadcast %cst_48 : f32 to vector<32x128xf32>
    %131 = arith.maximumf %129, %130 : vector<32x128xf32>
    %132 = arith.truncf %131 : vector<32x128xf32> to vector<32x128xbf16>
    %cst_49 = arith.constant dense<0.000000e+00> : vector<32x128xf32>
    %133 = tpu.matmul %132, %3, %cst_49 {dimension_numbers = #tpu.dot_dimension_numbers<[1], [0], [0], [1], [0, 0, 1, 1], [], []>} : vector<32x128xbf16>, vector<128x128xbf16>, vector<32x128xf32> -> vector<32x128xf32>
    %134 = arith.truncf %10 : vector<32x32xf32> to vector<32x32xbf16>
    %135 = arith.truncf %133 : vector<32x128xf32> to vector<32x128xbf16>
    %cst_50 = arith.constant dense<0.000000e+00> : vector<32x128xf32>
    %136 = tpu.matmul %134, %135, %cst_50 {dimension_numbers = #tpu.dot_dimension_numbers<[1], [0], [0], [1], [0, 0, 1, 1], [], []>} : vector<32x32xbf16>, vector<32x128xbf16>, vector<32x128xf32> -> vector<32x128xf32>
    %137 = vector.broadcast %8 : vector<1x128xf32> to vector<32x128xf32>
    %138 = arith.addf %136, %137 : vector<32x128xf32>
    %c0_51 = arith.constant 0 : index
    %c0_52 = arith.constant 0 : index
    %139 = vector.load %arg8[%c0_51, %c0_52] : memref<32x128xf32, #tpu.memory_space<vmem>>, vector<32x128xf32>
    tpu.vector_store %arg8[%c0_51, %c0_52], %138 {strides = array<i32>} : memref<32x128xf32, #tpu.memory_space<vmem>>, vector<32x128xf32>,
    %c0_53 = arith.constant 0 : index
    %c0_54 = arith.constant 0 : index
    %140 = vector.load %arg9[%c0_53, %c0_54] : memref<24x128xf32, #tpu.memory_space<vmem>>, vector<8x128xf32>
    tpu.vector_store %arg9[%c0_53, %c0_54], %34 {strides = array<i32>} : memref<24x128xf32, #tpu.memory_space<vmem>>, vector<8x128xf32>,
    %c8_55 = arith.constant 8 : index
    %c0_56 = arith.constant 0 : index
    %141 = vector.load %arg9[%c8_55, %c0_56] : memref<24x128xf32, #tpu.memory_space<vmem>>, vector<8x128xf32>
    tpu.vector_store %arg9[%c8_55, %c0_56], %118 {strides = array<i32>} : memref<24x128xf32, #tpu.memory_space<vmem>>, vector<8x128xf32>,
    %c16_57 = arith.constant 16 : index
    %c0_58 = arith.constant 0 : index
    %142 = vector.load %arg9[%c16_57, %c0_58] : memref<24x128xf32, #tpu.memory_space<vmem>>, vector<8x128xf32>
    tpu.vector_store %arg9[%c16_57, %c0_58], %35 {strides = array<i32>} : memref<24x128xf32, #tpu.memory_space<vmem>>, vector<8x128xf32>,
    return
  }
}

</mosaic_0001>

<llo_original>
// kernel: _forward_arrays.1
$region0: #{_forward_arrays.1}
  #allocation0 [shape = 'u32[]', space=smem, size = 0x4, offset = 0x4, fixed_abs, tag = 'smem constant byte address 0x4 - core index']
  #allocation1 [shape = 'u32[144,128]{1,0:T(1,128)}', space=vmem, size = 0x12000, scoped, tag = 'internal scratch']
  #allocation2 [shape = 'f32[1]{0:T(128)S(6)}', space=smem, size = 0x200, scoped, tag = 'scoped memory for _forward_arrays.1']
  %s0 = inlined_call_operand.<no memory space> [shape: f32[1], index: 0, kind: input, shape index: {}]
  %s1 = inlined_call_operand.vmem [shape: bf16[32,128], index: 1, kind: input, shape index: {}]
  %s2 = inlined_call_operand.hbm [shape: bf16[640,128], index: 2, kind: input, shape index: {}]
  %s3 = inlined_call_operand.vmem [shape: f32[40,128], index: 3, kind: input, shape index: {}]
  %s4 = inlined_call_operand.vmem [shape: f32[32,32], index: 4, kind: input, shape index: {}]
  %s5 = inlined_call_operand.vmem [shape: f32[16,16], index: 5, kind: input, shape index: {}]
  %s6 = inlined_call_operand.vmem [shape: f32[32,16], index: 6, kind: input, shape index: {}]
  %s7 = inlined_call_operand.vmem [shape: f32[16,32], index: 7, kind: input, shape index: {}]
  %s8 = inlined_call_operand.vmem [shape: f32[32,128], index: 8, kind: output, shape index: {0}]
  %s9 = inlined_call_operand.vmem [shape: f32[24,128], index: 9, kind: output, shape index: {1}]
  %10 = xla_tuple %s8, %s9
  %s11 = sld [smem:[#allocation0]]
  $region54: #{_forward_arrays.1} parent=0
    _
  %s13 = ssub.s32 1, %s11
  %s14 = scalar_select 0, %s13, %s11
  %15 = sst [smem:[#allocation2]] %s0
  $region1: #{_forward_arrays.1} parent=0
    #allocation3 [shape = 'u8[163840]{0}', space=vmem, size = 0x28000, scoped, tag = 'input window, operand 2, single buffered']
    #allocation4 [shape = 's32[1]{0}', space=sflag, size = 0x4, scoped, tag = 'scoped memory for _forward_arrays.1']
    %16 = vsyncpa [#allocation4], 0
    // Predicated region
    $region2: #{_forward_arrays.1} parent=1 // pred_check
      _
    $region3: #{_forward_arrays.1} parent=1 // pred_check_branch
      %18 = sbr.rel (0) target = $region5
    $region4: #{_forward_arrays.1} parent=1 // pred_region
      _
    $region5: #{_forward_arrays.1} parent=1 // pred_fallthru
      _
    // Predicated region
    $region6: #{_forward_arrays.1} parent=1 // pred_check
      _
    $region7: #{_forward_arrays.1} parent=1 // pred_check_branch
      %20 = sbr.rel (0) target = $region9
    $region8: #{_forward_arrays.1} parent=1 // pred_region
      _
    $region9: #{_forward_arrays.1} parent=1 // pred_fallthru
      _
    // Predicated region
    $region10: #{_forward_arrays.1} parent=1 // pred_check
      _
    $region11: #{_forward_arrays.1} parent=1 // pred_check_branch
      %22 = sbr.rel (0) target = $region13
    $region12: #{_forward_arrays.1} parent=1 // pred_region
      %s24 = ssub.s32 5120, 5120
      %25 = vsyncadd [#allocation4], %s24
      %s26 = sshll.u32 [#allocation3], 4
      %s27 = int_to_ptr.vmem [resolvable:$true] %s26
      %32 = dma.hbm_to_vmem [thread:$0]  %s2, 5120, %s27, [#allocation4], 64, 64, 4
    $region13: #{_forward_arrays.1} parent=1 // pred_fallthru
      _
    // Predicated region
    $region14: #{_forward_arrays.1} parent=1 // pred_check
      _
    $region15: #{_forward_arrays.1} parent=1 // pred_check_branch
      %34 = sbr.rel (0) target = $region17
    $region16: #{_forward_arrays.1} parent=1 // pred_region
      _
    $region17: #{_forward_arrays.1} parent=1 // pred_fallthru
      _
    // Predicated region
    $region18: #{_forward_arrays.1} parent=1 // pred_check
      _
    $region19: #{_forward_arrays.1} parent=1 // pred_check_branch
      %36 = sbr.rel (0) target = $region21
    $region20: #{_forward_arrays.1} parent=1 // pred_region
      _
    $region21: #{_forward_arrays.1} parent=1 // pred_fallthru
      _
    // Predicated region
    $region22: #{_forward_arrays.1} parent=1 // pred_check
      _
    $region23: #{_forward_arrays.1} parent=1 // pred_check_branch
      %38 = sbr.rel (0) target = $region25
    $region24: #{_forward_arrays.1} parent=1 // pred_region
      _
    $region25: #{_forward_arrays.1} parent=1 // pred_fallthru
      _
    // Predicated region
    $region26: #{_forward_arrays.1} parent=1 // pred_check
      _
    $region27: #{_forward_arrays.1} parent=1 // pred_check_branch
      %40 = sbr.rel (0) target = $region29
    $region28: #{_forward_arrays.1} parent=1 // pred_region
      _
    $region29: #{_forward_arrays.1} parent=1 // pred_fallthru
      _
    // Predicated region
    $region30: #{_forward_arrays.1} parent=1 // pred_check
      _
    $region31: #{_forward_arrays.1} parent=1 // pred_check_branch
      %42 = sbr.rel (0) target = $region33
    $region32: #{_forward_arrays.1} parent=1 // pred_region
      _
    $region33: #{_forward_arrays.1} parent=1 // pred_fallthru
      _
    // Predicated region
    $region34: #{_forward_arrays.1} parent=1 // pred_check
      _
    $region35: #{_forward_arrays.1} parent=1 // pred_check_branch
      %44 = sbr.rel (0) target = $region37
    $region36: #{_forward_arrays.1} parent=1 // pred_region
      %45 = dma.done [#allocation4], 5120
    $region37: #{_forward_arrays.1} parent=1 // pred_fallthru
      _
    %v47 = vld [vmem:[#allocation3] sm:$0xf]
    %v48 = vld [vmem:[#allocation3 + $0x4] sm:$0xf]
    %v49 = vld [vmem:[#allocation3 + $0x8] sm:$0xf]
    %v50 = vld [vmem:[#allocation3 + $0xc] sm:$0xf]
    %v51 = vld [vmem:[#allocation3 + $0x10] sm:$0xf]
    %v52 = vld [vmem:[#allocation3 + $0x14] sm:$0xf]
    %v53 = vld [vmem:[#allocation3 + $0x18] sm:$0xf]
    %v54 = vld [vmem:[#allocation3 + $0x1c] sm:$0xf]
    %v55 = vld [vmem:[#allocation3 + $0x20] sm:$0xf]
    %v56 = vld [vmem:[#allocation3 + $0x24] sm:$0xf]
    %v57 = vld [vmem:[#allocation3 + $0x28] sm:$0xf]
    %v58 = vld [vmem:[#allocation3 + $0x2c] sm:$0xf]
    %v59 = vld [vmem:[#allocation3 + $0x30] sm:$0xf]
    %v60 = vld [vmem:[#allocation3 + $0x34] sm:$0xf]
    %v61 = vld [vmem:[#allocation3 + $0x38] sm:$0xf]
    %v62 = vld [vmem:[#allocation3 + $0x3c] sm:$0xf]
    %v63 = vld [vmem:[#allocation3 + $0x40] sm:$0xf]
    %v64 = vld [vmem:[#allocation3 + $0x44] sm:$0xf]
    %v65 = vld [vmem:[#allocation3 + $0x48] sm:$0xf]
    %v66 = vld [vmem:[#allocation3 + $0x4c] sm:$0xf]
    %v67 = vld [vmem:[#allocation3 + $0x50] sm:$0xf]
    %v68 = vld [vmem:[#allocation3 + $0x54] sm:$0xf]
    %v69 = vld [vmem:[#allocation3 + $0x58] sm:$0xf]
    %v70 = vld [vmem:[#allocation3 + $0x5c] sm:$0xf]
    %v71 = vld [vmem:[#allocation3 + $0x60] sm:$0xf]
    %v72 = vld [vmem:[#allocation3 + $0x64] sm:$0xf]
    %v73 = vld [vmem:[#allocation3 + $0x68] sm:$0xf]
    %v74 = vld [vmem:[#allocation3 + $0x6c] sm:$0xf]
    %v75 = vld [vmem:[#allocation3 + $0x70] sm:$0xf]
    %v76 = vld [vmem:[#allocation3 + $0x74] sm:$0xf]
    %v77 = vld [vmem:[#allocation3 + $0x78] sm:$0xf]
    %v78 = vld [vmem:[#allocation3 + $0x7c] sm:$0xf]
    %v79 = vld [vmem:[#allocation3 + $0x80] sm:$0xf]
    %v80 = vld [vmem:[#allocation3 + $0x84] sm:$0xf]
    %v81 = vld [vmem:[#allocation3 + $0x88] sm:$0xf]
    %v82 = vld [vmem:[#allocation3 + $0x8c] sm:$0xf]
    %v83 = vld [vmem:[#allocation3 + $0x90] sm:$0xf]
    %v84 = vld [vmem:[#allocation3 + $0x94] sm:$0xf]
    %v85 = vld [vmem:[#allocation3 + $0x98] sm:$0xf]
    %v86 = vld [vmem:[#allocation3 + $0x9c] sm:$0xf]
    %v87 = vld [vmem:[#allocation3 + $0xa0] sm:$0xf]
    %v88 = vld [vmem:[#allocation3 + $0xa4] sm:$0xf]
    %v89 = vld [vmem:[#allocation3 + $0xa8] sm:$0xf]
    %v90 = vld [vmem:[#allocation3 + $0xac] sm:$0xf]
    %v91 = vld [vmem:[#allocation3 + $0xb0] sm:$0xf]
    %v92 = vld [vmem:[#allocation3 + $0xb4] sm:$0xf]
    %v93 = vld [vmem:[#allocation3 + $0xb8] sm:$0xf]
    %v94 = vld [vmem:[#allocation3 + $0xbc] sm:$0xf]
    %v95 = vld [vmem:[#allocation3 + $0xc0] sm:$0xf]
    %v96 = vld [vmem:[#allocation3 + $0xc4] sm:$0xf]
    %v97 = vld [vmem:[#allocation3 + $0xc8] sm:$0xf]
    %v98 = vld [vmem:[#allocation3 + $0xcc] sm:$0xf]
    %v99 = vld [vmem:[#allocation3 + $0xd0] sm:$0xf]
    %v100 = vld [vmem:[#allocation3 + $0xd4] sm:$0xf]
    %v101 = vld [vmem:[#allocation3 + $0xd8] sm:$0xf]
    %v102 = vld [vmem:[#allocation3 + $0xdc] sm:$0xf]
    %v103 = vld [vmem:[#allocation3 + $0xe0] sm:$0xf]
    %v104 = vld [vmem:[#allocation3 + $0xe4] sm:$0xf]
    %v105 = vld [vmem:[#allocation3 + $0xe8] sm:$0xf]
    %v106 = vld [vmem:[#allocation3 + $0xec] sm:$0xf]
    %v107 = vld [vmem:[#allocation3 + $0xf0] sm:$0xf]
    %v108 = vld [vmem:[#allocation3 + $0xf4] sm:$0xf]
    %v109 = vld [vmem:[#allocation3 + $0xf8] sm:$0xf]
    %v110 = vld [vmem:[#allocation3 + $0xfc] sm:$0xf]
    %v111 = vld [vmem:[#allocation3 + $0x100] sm:$0xf]
    %v112 = vld [vmem:[#allocation3 + $0x104] sm:$0xf]
    %v113 = vld [vmem:[#allocation3 + $0x108] sm:$0xf]
    %v114 = vld [vmem:[#allocation3 + $0x10c] sm:$0xf]
    %v115 = vld [vmem:[#allocation3 + $0x110] sm:$0xf]
    %v116 = vld [vmem:[#allocation3 + $0x114] sm:$0xf]
    %v117 = vld [vmem:[#allocation3 + $0x118] sm:$0xf]
    %v118 = vld [vmem:[#allocation3 + $0x11c] sm:$0xf]
    %v119 = vld [vmem:[#allocation3 + $0x120] sm:$0xf]
    %v120 = vld [vmem:[#allocation3 + $0x124] sm:$0xf]
    %v121 = vld [vmem:[#allocation3 + $0x128] sm:$0xf]
    %v122 = vld [vmem:[#allocation3 + $0x12c] sm:$0xf]
    %v123 = vld [vmem:[#allocation3 + $0x130] sm:$0xf]
    %v124 = vld [vmem:[#allocation3 + $0x134] sm:$0xf]
    %v125 = vld [vmem:[#allocation3 + $0x138] sm:$0xf]
    %v126 = vld [vmem:[#allocation3 + $0x13c] sm:$0xf]
    %v127 = vld [vmem:[%s3] sm:$0x1]
    %v128 = vld [vmem:[%s3 + $0x8] sm:$0x1]
    %v129 = vld [vmem:[%s3 + $0x10] sm:$0x1]
    %v130 = vld [vmem:[%s3 + $0x18] sm:$0x1]
    %v131 = vld [vmem:[%s3 + $0x20] sm:$0x1]
    %v132 = vld [vmem:[%s4] sm:$0xff]
    %v133 = vld [vmem:[%s4 + $0x8] sm:$0xff]
    %v134 = vld [vmem:[%s4 + $0x10] sm:$0xff]
    %v135 = vld [vmem:[%s4 + $0x18] sm:$0xff]
    %v136 = vld [vmem:[%s5] sm:$0xff]
    %v137 = vld [vmem:[%s5 + $0x8] sm:$0xff]
    %v138 = vld [vmem:[%s6] sm:$0xff]
    %v139 = vld [vmem:[%s6 + $0x8] sm:$0xff]
    %v140 = vld [vmem:[%s6 + $0x10] sm:$0xff]
    %v141 = vld [vmem:[%s6 + $0x18] sm:$0xff]
    %v142 = vld [vmem:[%s7] sm:$0xff]
    %v143 = vld [vmem:[%s7 + $0x8] sm:$0xff]
    %v144 = vld [vmem:[%s1] sm:$0xf]
    %v145 = vld [vmem:[%s1 + $0x4] sm:$0xf]
    %v146 = vld [vmem:[%s1 + $0x8] sm:$0xf]
    %v147 = vld [vmem:[%s1 + $0xc] sm:$0xf]
    %v152 = vunpack.c.l.b16 %v144
    %v153 = vunpack.c.l.b16 %v145
    %v154 = vunpack.c.l.b16 %v146
    %v155 = vunpack.c.l.b16 %v147
    %v156 = vpack.c.b16 %v153, %v152
    %v157 = vpack.c.b16 %v155, %v154
    %v176 = vunpack.c.l.b16 %v47
    %v177 = vunpack.c.l.b16 %v48
    %v178 = vunpack.c.l.b16 %v49
    %v179 = vunpack.c.l.b16 %v50
    %v180 = vunpack.c.l.b16 %v51
    %v181 = vunpack.c.l.b16 %v52
    %v182 = vunpack.c.l.b16 %v53
    %v183 = vunpack.c.l.b16 %v54
    %v184 = vunpack.c.l.b16 %v55
    %v185 = vunpack.c.l.b16 %v56
    %v186 = vunpack.c.l.b16 %v57
    %v187 = vunpack.c.l.b16 %v58
    %v188 = vunpack.c.l.b16 %v59
    %v189 = vunpack.c.l.b16 %v60
    %v190 = vunpack.c.l.b16 %v61
    %v191 = vunpack.c.l.b16 %v62
    %v192 = vpack.c.b16 %v177, %v176
    %v193 = vpack.c.b16 %v179, %v178
    %v194 = vpack.c.b16 %v181, %v180
    %v195 = vpack.c.b16 %v183, %v182
    %v196 = vpack.c.b16 %v185, %v184
    %v197 = vpack.c.b16 %v187, %v186
    %v198 = vpack.c.b16 %v189, %v188
    %v199 = vpack.c.b16 %v191, %v190
    %208 = vmatprep.subr.bf16.mxu0 0
    %209 = vmatpush1.bf16.msra.mxu0 %v192
    %210 = vmatprep.subr.bf16.mxu0 0
    %211 = vmatpush1.bf16.msra.mxu0 %v193
    %212 = vmatprep.subr.bf16.mxu0 0
    %213 = vmatpush1.bf16.msra.mxu0 %v194
    %214 = vmatprep.subr.bf16.mxu0 0
    %215 = vmatpush1.bf16.msra.mxu0 %v195
    %216 = vmatprep.subr.bf16.mxu0 0
    %217 = vmatpush1.bf16.msra.mxu0 %v196
    %218 = vmatprep.subr.bf16.mxu0 0
    %219 = vmatpush1.bf16.msra.mxu0 %v197
    %220 = vmatprep.subr.bf16.mxu0 0
    %221 = vmatpush1.bf16.msra.mxu0 %v198
    %222 = vmatprep.subr.bf16.mxu0 0
    %223 = vmatpush1.bf16.msra.mxu0 %v199
    %224 = vmatprep.subr.bf16.mxu0 0
    %225 = vmatpush1.bf16.msra.mxu0 0
    %226 = vmatprep.subr.bf16.mxu0 0
    %227 = vmatpush1.bf16.msra.mxu0 0
    %228 = vmatprep.subr.bf16.mxu0 0
    %229 = vmatpush1.bf16.msra.mxu0 0
    %230 = vmatprep.subr.bf16.mxu0 0
    %231 = vmatpush1.bf16.msra.mxu0 0
    %232 = vmatprep.subr.bf16.mxu0 0
    %233 = vmatpush1.bf16.msra.mxu0 0
    %234 = vmatprep.subr.bf16.mxu0 0
    %235 = vmatpush1.bf16.msra.mxu0 0
    %236 = vmatprep.subr.bf16.mxu0 0
    %237 = vmatpush1.bf16.msra.mxu0 0
    %238 = vmatprep.subr.bf16.mxu0 0
    %239 = vmatpush1.bf16.msra.mxu0 0
    %240 = vmatprep.mubr.bf16.mxu0 0
    %241 = vmatmul.mubr.bf16.gmra.mrb[0].mxu0 %v156
    %v242 = vpop.f32.mrb[0].mxu0
    %v243 = vadd.f32 0.0, %v242
    %v244 = vpop.f32.mrb[0].mxu0
    %v245 = vpop.f32.mrb[0].mxu0
    %v246 = vadd.f32 0.0, %v245
    %v247 = vpop.f32.mrb[0].mxu0
    %248 = vmatprep.mubr.bf16.mxu0 0
    %249 = vmatmul.mubr.bf16.gmra.mrb[0].mxu0 %v157
    %v250 = vpop.f32.mrb[0].mxu0
    %v251 = vadd.f32 0.0, %v250
    %v252 = vpop.f32.mrb[0].mxu0
    %v253 = vpop.f32.mrb[0].mxu0
    %v254 = vadd.f32 0.0, %v253
    %v255 = vpop.f32.mrb[0].mxu0
    %256 = vdwg.mxu0
    %v257 = vpack.c.bf16 %v133, %v132
    %v258 = vpack.c.bf16 %v135, %v134
    %v259 = vpack.c.bf16 %v246, %v243
    %v260 = vpack.c.bf16 %v254, %v251
    %v261 = vlaneseq
    %v262 = vshrl.u32 %v261, 7
    %v263 = vsub.s32 0, %v262
    %v264 = vrot.slane %v127, %v263
    %vm265 = vcmask 261120
    %v267 = vsel %vm265, %v257, 0
    %v270 = vsel %vm265, %v258, 0
    %272 = vmatprep.subr.bf16.mxu0 0
    %273 = vmatpush1.bf16.msra.mxu0 %v259
    %274 = vmatprep.subr.bf16.mxu0 0
    %275 = vmatpush1.bf16.msra.mxu0 %v260
    %276 = vmatprep.subr.bf16.mxu0 0
    %277 = vmatpush1.bf16.msra.mxu0 0
    %278 = vmatprep.subr.bf16.mxu0 0
    %279 = vmatpush1.bf16.msra.mxu0 0
    %280 = vmatprep.subr.bf16.mxu0 0
    %281 = vmatpush1.bf16.msra.mxu0 0
    %282 = vmatprep.subr.bf16.mxu0 0
    %283 = vmatpush1.bf16.msra.mxu0 0
    %284 = vmatprep.subr.bf16.mxu0 0
    %285 = vmatpush1.bf16.msra.mxu0 0
    %286 = vmatprep.subr.bf16.mxu0 0
    %287 = vmatpush1.bf16.msra.mxu0 0
    %288 = vmatprep.subr.bf16.mxu0 0
    %289 = vmatpush1.bf16.msra.mxu0 0
    %290 = vmatprep.subr.bf16.mxu0 0
    %291 = vmatpush1.bf16.msra.mxu0 0
    %292 = vmatprep.subr.bf16.mxu0 0
    %293 = vmatpush1.bf16.msra.mxu0 0
    %294 = vmatprep.subr.bf16.mxu0 0
    %295 = vmatpush1.bf16.msra.mxu0 0
    %296 = vmatprep.subr.bf16.mxu0 0
    %297 = vmatpush1.bf16.msra.mxu0 0
    %298 = vmatprep.subr.bf16.mxu0 0
    %299 = vmatpush1.bf16.msra.mxu0 0
    %300 = vmatprep.subr.bf16.mxu0 0
    %301 = vmatpush1.bf16.msra.mxu0 0
    %302 = vmatprep.subr.bf16.mxu0 0
    %303 = vmatpush1.bf16.msra.mxu0 0
    %304 = vmatprep.mubr.bf16.mxu0 0
    %305 = vmatmul.mubr.bf16.gmra.mrb[0].mxu0 %v267
    %v306 = vpop.f32.mrb[0].mxu0
    %v307 = vadd.f32 %v264, %v306
    %v308 = vpop.f32.mrb[0].mxu0
    %v309 = vpop.f32.mrb[0].mxu0
    %v310 = vadd.f32 %v264, %v309
    %v311 = vpop.f32.mrb[0].mxu0
    %312 = vmatprep.mubr.bf16.mxu0 0
    %313 = vmatmul.mubr.bf16.gmra.mrb[0].mxu0 %v270
    %v314 = vpop.f32.mrb[0].mxu0
    %v315 = vadd.f32 %v264, %v314
    %v316 = vpop.f32.mrb[0].mxu0
    %v317 = vpop.f32.mrb[0].mxu0
    %v318 = vadd.f32 %v264, %v317
    %v319 = vpop.f32.mrb[0].mxu0
    %320 = vdwg.mxu0
    %v321 = vmax.f32 %v307, 0.0
    %v322 = vmax.f32 %v310, 0.0
    %v323 = vmax.f32 %v315, 0.0
    %v324 = vmax.f32 %v318, 0.0
    %v325 = vpack.c.bf16 %v143, %v142
    %v326 = vpack.c.bf16 %v322, %v321
    %v327 = vpack.c.bf16 %v324, %v323
    %v329 = vsel %vm265, %v325, 0
    %331 = vmatprep.subr.bf16.mxu0 0
    %332 = vmatpush1.bf16.msra.mxu0 %v326
    %333 = vmatprep.subr.bf16.mxu0 0
    %334 = vmatpush1.bf16.msra.mxu0 %v327
    %335 = vmatprep.subr.bf16.mxu0 0
    %336 = vmatpush1.bf16.msra.mxu0 0
    %337 = vmatprep.subr.bf16.mxu0 0
    %338 = vmatpush1.bf16.msra.mxu0 0
    %339 = vmatprep.subr.bf16.mxu0 0
    %340 = vmatpush1.bf16.msra.mxu0 0
    %341 = vmatprep.subr.bf16.mxu0 0
    %342 = vmatpush1.bf16.msra.mxu0 0
    %343 = vmatprep.subr.bf16.mxu0 0
    %344 = vmatpush1.bf16.msra.mxu0 0
    %345 = vmatprep.subr.bf16.mxu0 0
    %346 = vmatpush1.bf16.msra.mxu0 0
    %347 = vmatprep.subr.bf16.mxu0 0
    %348 = vmatpush1.bf16.msra.mxu0 0
    %349 = vmatprep.subr.bf16.mxu0 0
    %350 = vmatpush1.bf16.msra.mxu0 0
    %351 = vmatprep.subr.bf16.mxu0 0
    %352 = vmatpush1.bf16.msra.mxu0 0
    %353 = vmatprep.subr.bf16.mxu0 0
    %354 = vmatpush1.bf16.msra.mxu0 0
    %355 = vmatprep.subr.bf16.mxu0 0
    %356 = vmatpush1.bf16.msra.mxu0 0
    %357 = vmatprep.subr.bf16.mxu0 0
    %358 = vmatpush1.bf16.msra.mxu0 0
    %359 = vmatprep.subr.bf16.mxu0 0
    %360 = vmatpush1.bf16.msra.mxu0 0
    %361 = vmatprep.subr.bf16.mxu0 0
    %362 = vmatpush1.bf16.msra.mxu0 0
    %363 = vmatprep.mubr.bf16.mxu0 0
    %364 = vmatmul.mubr.bf16.gmra.mrb[0].mxu0 %v329
    %v365 = vpop.f32.mrb[0].mxu0
    %v366 = vadd.f32 0.0, %v365
    %v367 = vpop.f32.mrb[0].mxu0
    %v368 = vpop.f32.mrb[0].mxu0
    %v369 = vadd.f32 0.0, %v368
    %v370 = vpop.f32.mrb[0].mxu0
    %371 = vdwg.mxu0
    %v372 = vpack.c.bf16 %v369, %v366
    %v389 = vunpack.c.l.b16 %v63
    %v390 = vunpack.c.l.b16 %v64
    %v391 = vunpack.c.l.b16 %v65
    %v392 = vunpack.c.l.b16 %v66
    %v393 = vunpack.c.l.b16 %v67
    %v394 = vunpack.c.l.b16 %v68
    %v395 = vunpack.c.l.b16 %v69
    %v396 = vunpack.c.l.b16 %v70
    %v397 = vunpack.c.l.b16 %v71
    %v398 = vunpack.c.l.b16 %v72
    %v399 = vunpack.c.l.b16 %v73
    %v400 = vunpack.c.l.b16 %v74
    %v401 = vunpack.c.l.b16 %v75
    %v402 = vunpack.c.l.b16 %v76
    %v403 = vunpack.c.l.b16 %v77
    %v404 = vunpack.c.l.b16 %v78
    %v405 = vpack.c.b16 %v390, %v389
    %v406 = vpack.c.b16 %v392, %v391
    %v407 = vpack.c.b16 %v394, %v393
    %v408 = vpack.c.b16 %v396, %v395
    %v409 = vpack.c.b16 %v398, %v397
    %v410 = vpack.c.b16 %v400, %v399
    %v411 = vpack.c.b16 %v402, %v401
    %v412 = vpack.c.b16 %v404, %v403
    %421 = vmatprep.subr.bf16.mxu0 0
    %422 = vmatpush1.bf16.msra.mxu0 %v405
    %423 = vmatprep.subr.bf16.mxu0 0
    %424 = vmatpush1.bf16.msra.mxu0 %v406
    %425 = vmatprep.subr.bf16.mxu0 0
    %426 = vmatpush1.bf16.msra.mxu0 %v407
    %427 = vmatprep.subr.bf16.mxu0 0
    %428 = vmatpush1.bf16.msra.mxu0 %v408
    %429 = vmatprep.subr.bf16.mxu0 0
    %430 = vmatpush1.bf16.msra.mxu0 %v409
    %431 = vmatprep.subr.bf16.mxu0 0
    %432 = vmatpush1.bf16.msra.mxu0 %v410
    %433 = vmatprep.subr.bf16.mxu0 0
    %434 = vmatpush1.bf16.msra.mxu0 %v411
    %435 = vmatprep.subr.bf16.mxu0 0
    %436 = vmatpush1.bf16.msra.mxu0 %v412
    %437 = vmatprep.subr.bf16.mxu0 0
    %438 = vmatpush1.bf16.msra.mxu0 0
    %439 = vmatprep.subr.bf16.mxu0 0
    %440 = vmatpush1.bf16.msra.mxu0 0
    %441 = vmatprep.subr.bf16.mxu0 0
    %442 = vmatpush1.bf16.msra.mxu0 0
    %443 = vmatprep.subr.bf16.mxu0 0
    %444 = vmatpush1.bf16.msra.mxu0 0
    %445 = vmatprep.subr.bf16.mxu0 0
    %446 = vmatpush1.bf16.msra.mxu0 0
    %447 = vmatprep.subr.bf16.mxu0 0
    %448 = vmatpush1.bf16.msra.mxu0 0
    %449 = vmatprep.subr.bf16.mxu0 0
    %450 = vmatpush1.bf16.msra.mxu0 0
    %451 = vmatprep.subr.bf16.mxu0 0
    %452 = vmatpush1.bf16.msra.mxu0 0
    %453 = vmatprep.mubr.bf16.mxu0 0
    %454 = vmatmul.mubr.bf16.gmra.mrb[0].mxu0 %v372
    %v455 = vpop.f32.mrb[0].mxu0
    %v456 = vadd.f32 0.0, %v455
    %v457 = vpop.f32.mrb[0].mxu0
    %v458 = vpop.f32.mrb[0].mxu0
    %v459 = vadd.f32 0.0, %v458
    %v460 = vpop.f32.mrb[0].mxu0
    %461 = vdwg.mxu0
    %v462 = vpack.c.bf16 %v137, %v136
    %v463 = vpack.c.bf16 %v459, %v456
    %v464 = vlaneseq
    %v465 = vshrl.u32 %v464, 7
    %v466 = vsub.s32 0, %v465
    %v467 = vrot.slane %v128, %v466
    %vm468 = vcmask 130048
    %v470 = vsel %vm468, %v462, 0
    %472 = vmatprep.subr.bf16.mxu0 0
    %473 = vmatpush1.bf16.msra.mxu0 %v463
    %474 = vmatprep.subr.bf16.mxu0 0
    %475 = vmatpush1.bf16.msra.mxu0 0
    %476 = vmatprep.subr.bf16.mxu0 0
    %477 = vmatpush1.bf16.msra.mxu0 0
    %478 = vmatprep.subr.bf16.mxu0 0
    %479 = vmatpush1.bf16.msra.mxu0 0
    %480 = vmatprep.subr.bf16.mxu0 0
    %481 = vmatpush1.bf16.msra.mxu0 0
    %482 = vmatprep.subr.bf16.mxu0 0
    %483 = vmatpush1.bf16.msra.mxu0 0
    %484 = vmatprep.subr.bf16.mxu0 0
    %485 = vmatpush1.bf16.msra.mxu0 0
    %486 = vmatprep.subr.bf16.mxu0 0
    %487 = vmatpush1.bf16.msra.mxu0 0
    %488 = vmatprep.subr.bf16.mxu0 0
    %489 = vmatpush1.bf16.msra.mxu0 0
    %490 = vmatprep.subr.bf16.mxu0 0
    %491 = vmatpush1.bf16.msra.mxu0 0
    %492 = vmatprep.subr.bf16.mxu0 0
    %493 = vmatpush1.bf16.msra.mxu0 0
    %494 = vmatprep.subr.bf16.mxu0 0
    %495 = vmatpush1.bf16.msra.mxu0 0
    %496 = vmatprep.subr.bf16.mxu0 0
    %497 = vmatpush1.bf16.msra.mxu0 0
    %498 = vmatprep.subr.bf16.mxu0 0
    %499 = vmatpush1.bf16.msra.mxu0 0
    %500 = vmatprep.subr.bf16.mxu0 0
    %501 = vmatpush1.bf16.msra.mxu0 0
    %502 = vmatprep.subr.bf16.mxu0 0
    %503 = vmatpush1.bf16.msra.mxu0 0
    %504 = vmatprep.mubr.bf16.mxu0 0
    %505 = vmatmul.mubr.bf16.gmra.mrb[0].mxu0 %v470
    %v506 = vpop.f32.mrb[0].mxu0
    %v507 = vadd.f32 %v467, %v506
    %v508 = vpop.f32.mrb[0].mxu0
    %v509 = vpop.f32.mrb[0].mxu0
    %v510 = vadd.f32 %v467, %v509
    %v511 = vpop.f32.mrb[0].mxu0
    %512 = vdwg.mxu0
    %s513 = sld [smem:[#allocation2]]
    %v514 = vlaneseq
    %v515 = vshrl.u32 %v514, 7
    %v516 = vsub.s32 0, %v515
    %v517 = vrot.slane %v131, %v516
    %v518 = vpack.c.bf16 %v507, %v507
    %v535 = vunpack.c.l.b16 %v111
    %v536 = vunpack.c.l.b16 %v112
    %v537 = vunpack.c.l.b16 %v113
    %v538 = vunpack.c.l.b16 %v114
    %v539 = vunpack.c.l.b16 %v115
    %v540 = vunpack.c.l.b16 %v116
    %v541 = vunpack.c.l.b16 %v117
    %v542 = vunpack.c.l.b16 %v118
    %v543 = vunpack.c.l.b16 %v119
    %v544 = vunpack.c.l.b16 %v120
    %v545 = vunpack.c.l.b16 %v121
    %v546 = vunpack.c.l.b16 %v122
    %v547 = vunpack.c.l.b16 %v123
    %v548 = vunpack.c.l.b16 %v124
    %v549 = vunpack.c.l.b16 %v125
    %v550 = vunpack.c.l.b16 %v126
    %v551 = vpack.c.b16 %v536, %v535
    %v552 = vpack.c.b16 %v538, %v537
    %v553 = vpack.c.b16 %v540, %v539
    %v554 = vpack.c.b16 %v542, %v541
    %v555 = vpack.c.b16 %v544, %v543
    %v556 = vpack.c.b16 %v546, %v545
    %v557 = vpack.c.b16 %v548, %v547
    %v558 = vpack.c.b16 %v550, %v549
    %567 = vmatprep.subr.bf16.mxu0 0
    %568 = vmatpush1.bf16.msra.mxu0 %v551
    %569 = vmatprep.subr.bf16.mxu0 0
    %570 = vmatpush1.bf16.msra.mxu0 %v552
    %571 = vmatprep.subr.bf16.mxu0 0
    %572 = vmatpush1.bf16.msra.mxu0 %v553
    %573 = vmatprep.subr.bf16.mxu0 0
    %574 = vmatpush1.bf16.msra.mxu0 %v554
    %575 = vmatprep.subr.bf16.mxu0 0
    %576 = vmatpush1.bf16.msra.mxu0 %v555
    %577 = vmatprep.subr.bf16.mxu0 0
    %578 = vmatpush1.bf16.msra.mxu0 %v556
    %579 = vmatprep.subr.bf16.mxu0 0
    %580 = vmatpush1.bf16.msra.mxu0 %v557
    %581 = vmatprep.subr.bf16.mxu0 0
    %582 = vmatpush1.bf16.msra.mxu0 %v558
    %583 = vmatprep.subr.bf16.mxu0 0
    %584 = vmatpush1.bf16.msra.mxu0 0
    %585 = vmatprep.subr.bf16.mxu0 0
    %586 = vmatpush1.bf16.msra.mxu0 0
    %587 = vmatprep.subr.bf16.mxu0 0
    %588 = vmatpush1.bf16.msra.mxu0 0
    %589 = vmatprep.subr.bf16.mxu0 0
    %590 = vmatpush1.bf16.msra.mxu0 0
    %591 = vmatprep.subr.bf16.mxu0 0
    %592 = vmatpush1.bf16.msra.mxu0 0
    %593 = vmatprep.subr.bf16.mxu0 0
    %594 = vmatpush1.bf16.msra.mxu0 0
    %595 = vmatprep.subr.bf16.mxu0 0
    %596 = vmatpush1.bf16.msra.mxu0 0
    %597 = vmatprep.subr.bf16.mxu0 0
    %598 = vmatpush1.bf16.msra.mxu0 0
    %599 = vmatprep.mubr.bf16.mxu0 0
    %600 = vmatmul.mubr.bf16.gmra.mrb[0].mxu0 %v518
    %v601 = vpop.f32.mrb[0].mxu0
    %v602 = vadd.f32 0.0, %v601
    %v603 = vpop.f32.mrb[0].mxu0
    %v604 = vpop.f32.mrb[0].mxu0
    %v605 = vpop.f32.mrb[0].mxu0
    %606 = vdwg.mxu0
    %v607 = vpack.c.bf16 %v136, %v136
    %v608 = vpack.c.bf16 %v602, %v602
    %vm609 = vcmask 64512
    %v611 = vsel %vm609, %v607, 0
    %vm613 = vcmask 1043456
    %v615 = vsel %vm613, %v608, 0
    %617 = vmatprep.subr.bf16.mxu0 0
    %618 = vmatpush1.bf16.msra.mxu0 %v615
    %619 = vmatprep.subr.bf16.mxu0 0
    %620 = vmatpush1.bf16.msra.mxu0 0
    %621 = vmatprep.subr.bf16.mxu0 0
    %622 = vmatpush1.bf16.msra.mxu0 0
    %623 = vmatprep.subr.bf16.mxu0 0
    %624 = vmatpush1.bf16.msra.mxu0 0
    %625 = vmatprep.subr.bf16.mxu0 0
    %626 = vmatpush1.bf16.msra.mxu0 0
    %627 = vmatprep.subr.bf16.mxu0 0
    %628 = vmatpush1.bf16.msra.mxu0 0
    %629 = vmatprep.subr.bf16.mxu0 0
    %630 = vmatpush1.bf16.msra.mxu0 0
    %631 = vmatprep.subr.bf16.mxu0 0
    %632 = vmatpush1.bf16.msra.mxu0 0
    %633 = vmatprep.subr.bf16.mxu0 0
    %634 = vmatpush1.bf16.msra.mxu0 0
    %635 = vmatprep.subr.bf16.mxu0 0
    %636 = vmatpush1.bf16.msra.mxu0 0
    %637 = vmatprep.subr.bf16.mxu0 0
    %638 = vmatpush1.bf16.msra.mxu0 0
    %639 = vmatprep.subr.bf16.mxu0 0
    %640 = vmatpush1.bf16.msra.mxu0 0
    %641 = vmatprep.subr.bf16.mxu0 0
    %642 = vmatpush1.bf16.msra.mxu0 0
    %643 = vmatprep.subr.bf16.mxu0 0
    %644 = vmatpush1.bf16.msra.mxu0 0
    %645 = vmatprep.subr.bf16.mxu0 0
    %646 = vmatpush1.bf16.msra.mxu0 0
    %647 = vmatprep.subr.bf16.mxu0 0
    %648 = vmatpush1.bf16.msra.mxu0 0
    %649 = vmatprep.mubr.bf16.mxu0 0
    %650 = vmatmul.mubr.bf16.gmra.mrb[0].mxu0 %v611
    %v651 = vpop.f32.mrb[0].mxu0
    %v652 = vadd.f32 %v517, %v651
    %v653 = vpop.f32.mrb[0].mxu0
    %v654 = vpop.f32.mrb[0].mxu0
    %v655 = vpop.f32.mrb[0].mxu0
    %656 = vdwg.mxu0
    %v657 = vtanh.pop %v652
    %v658 = vstv %s513
    %v659 = vmul.f32 %v658, %v657
    %v660 = vadd.f32 %v507, %v659
    %v661 = vpack.c.bf16 %v660, %v660
    %662 = vmatprep.subr.bf16.mxu0 0
    %663 = vmatpush1.bf16.msra.mxu0 %v551
    %664 = vmatprep.subr.bf16.mxu0 0
    %665 = vmatpush1.bf16.msra.mxu0 %v552
    %666 = vmatprep.subr.bf16.mxu0 0
    %667 = vmatpush1.bf16.msra.mxu0 %v553
    %668 = vmatprep.subr.bf16.mxu0 0
    %669 = vmatpush1.bf16.msra.mxu0 %v554
    %670 = vmatprep.subr.bf16.mxu0 0
    %671 = vmatpush1.bf16.msra.mxu0 %v555
    %672 = vmatprep.subr.bf16.mxu0 0
    %673 = vmatpush1.bf16.msra.mxu0 %v556
    %674 = vmatprep.subr.bf16.mxu0 0
    %675 = vmatpush1.bf16.msra.mxu0 %v557
    %676 = vmatprep.subr.bf16.mxu0 0
    %677 = vmatpush1.bf16.msra.mxu0 %v558
    %678 = vmatprep.subr.bf16.mxu0 0
    %679 = vmatpush1.bf16.msra.mxu0 0
    %680 = vmatprep.subr.bf16.mxu0 0
    %681 = vmatpush1.bf16.msra.mxu0 0
    %682 = vmatprep.subr.bf16.mxu0 0
    %683 = vmatpush1.bf16.msra.mxu0 0
    %684 = vmatprep.subr.bf16.mxu0 0
    %685 = vmatpush1.bf16.msra.mxu0 0
    %686 = vmatprep.subr.bf16.mxu0 0
    %687 = vmatpush1.bf16.msra.mxu0 0
    %688 = vmatprep.subr.bf16.mxu0 0
    %689 = vmatpush1.bf16.msra.mxu0 0
    %690 = vmatprep.subr.bf16.mxu0 0
    %691 = vmatpush1.bf16.msra.mxu0 0
    %692 = vmatprep.subr.bf16.mxu0 0
    %693 = vmatpush1.bf16.msra.mxu0 0
    %694 = vmatprep.mubr.bf16.mxu0 0
    %695 = vmatmul.mubr.bf16.gmra.mrb[0].mxu0 %v661
    %v696 = vpop.f32.mrb[0].mxu0
    %v697 = vadd.f32 0.0, %v696
    %v698 = vpop.f32.mrb[0].mxu0
    %v699 = vpop.f32.mrb[0].mxu0
    %v700 = vpop.f32.mrb[0].mxu0
    %701 = vdwg.mxu0
    %v702 = vpack.c.bf16 %v697, %v697
    %v704 = vsel %vm613, %v702, 0
    %706 = vmatprep.subr.bf16.mxu0 0
    %707 = vmatpush1.bf16.msra.mxu0 %v704
    %708 = vmatprep.subr.bf16.mxu0 0
    %709 = vmatpush1.bf16.msra.mxu0 0
    %710 = vmatprep.subr.bf16.mxu0 0
    %711 = vmatpush1.bf16.msra.mxu0 0
    %712 = vmatprep.subr.bf16.mxu0 0
    %713 = vmatpush1.bf16.msra.mxu0 0
    %714 = vmatprep.subr.bf16.mxu0 0
    %715 = vmatpush1.bf16.msra.mxu0 0
    %716 = vmatprep.subr.bf16.mxu0 0
    %717 = vmatpush1.bf16.msra.mxu0 0
    %718 = vmatprep.subr.bf16.mxu0 0
    %719 = vmatpush1.bf16.msra.mxu0 0
    %720 = vmatprep.subr.bf16.mxu0 0
    %721 = vmatpush1.bf16.msra.mxu0 0
    %722 = vmatprep.subr.bf16.mxu0 0
    %723 = vmatpush1.bf16.msra.mxu0 0
    %724 = vmatprep.subr.bf16.mxu0 0
    %725 = vmatpush1.bf16.msra.mxu0 0
    %726 = vmatprep.subr.bf16.mxu0 0
    %727 = vmatpush1.bf16.msra.mxu0 0
    %728 = vmatprep.subr.bf16.mxu0 0
    %729 = vmatpush1.bf16.msra.mxu0 0
    %730 = vmatprep.subr.bf16.mxu0 0
    %731 = vmatpush1.bf16.msra.mxu0 0
    %732 = vmatprep.subr.bf16.mxu0 0
    %733 = vmatpush1.bf16.msra.mxu0 0
    %734 = vmatprep.subr.bf16.mxu0 0
    %735 = vmatpush1.bf16.msra.mxu0 0
    %736 = vmatprep.subr.bf16.mxu0 0
    %737 = vmatpush1.bf16.msra.mxu0 0
    %738 = vmatprep.mubr.bf16.mxu0 0
    %739 = vmatmul.mubr.bf16.gmra.mrb[0].mxu0 %v611
    %v740 = vpop.f32.mrb[0].mxu0
    %v741 = vadd.f32 %v517, %v740
    %v742 = vpop.f32.mrb[0].mxu0
    %v743 = vpop.f32.mrb[0].mxu0
    %v744 = vpop.f32.mrb[0].mxu0
    %745 = vdwg.mxu0
    %v746 = vtanh.pop %v741
    %v747 = vmul.f32 %v658, %v746
    %v748 = vadd.f32 %v660, %v747
    %v749 = vpack.c.bf16 %v748, %v748
    %750 = vmatprep.subr.bf16.mxu0 0
    %751 = vmatpush1.bf16.msra.mxu0 %v551
    %752 = vmatprep.subr.bf16.mxu0 0
    %753 = vmatpush1.bf16.msra.mxu0 %v552
    %754 = vmatprep.subr.bf16.mxu0 0
    %755 = vmatpush1.bf16.msra.mxu0 %v553
    %756 = vmatprep.subr.bf16.mxu0 0
    %757 = vmatpush1.bf16.msra.mxu0 %v554
    %758 = vmatprep.subr.bf16.mxu0 0
    %759 = vmatpush1.bf16.msra.mxu0 %v555
    %760 = vmatprep.subr.bf16.mxu0 0
    %761 = vmatpush1.bf16.msra.mxu0 %v556
    %762 = vmatprep.subr.bf16.mxu0 0
    %763 = vmatpush1.bf16.msra.mxu0 %v557
    %764 = vmatprep.subr.bf16.mxu0 0
    %765 = vmatpush1.bf16.msra.mxu0 %v558
    %766 = vmatprep.subr.bf16.mxu0 0
    %767 = vmatpush1.bf16.msra.mxu0 0
    %768 = vmatprep.subr.bf16.mxu0 0
    %769 = vmatpush1.bf16.msra.mxu0 0
    %770 = vmatprep.subr.bf16.mxu0 0
    %771 = vmatpush1.bf16.msra.mxu0 0
    %772 = vmatprep.subr.bf16.mxu0 0
    %773 = vmatpush1.bf16.msra.mxu0 0
    %774 = vmatprep.subr.bf16.mxu0 0
    %775 = vmatpush1.bf16.msra.mxu0 0
    %776 = vmatprep.subr.bf16.mxu0 0
    %777 = vmatpush1.bf16.msra.mxu0 0
    %778 = vmatprep.subr.bf16.mxu0 0
    %779 = vmatpush1.bf16.msra.mxu0 0
    %780 = vmatprep.subr.bf16.mxu0 0
    %781 = vmatpush1.bf16.msra.mxu0 0
    %782 = vmatprep.mubr.bf16.mxu0 0
    %783 = vmatmul.mubr.bf16.gmra.mrb[0].mxu0 %v749
    %v784 = vpop.f32.mrb[0].mxu0
    %v785 = vadd.f32 0.0, %v784
    %v786 = vpop.f32.mrb[0].mxu0
    %v787 = vpop.f32.mrb[0].mxu0
    %v788 = vpop.f32.mrb[0].mxu0
    %789 = vdwg.mxu0
    %v790 = vpack.c.bf16 %v785, %v785
    %v792 = vsel %vm613, %v790, 0
    %794 = vmatprep.subr.bf16.mxu0 0
    %795 = vmatpush1.bf16.msra.mxu0 %v792
    %796 = vmatprep.subr.bf16.mxu0 0
    %797 = vmatpush1.bf16.msra.mxu0 0
    %798 = vmatprep.subr.bf16.mxu0 0
    %799 = vmatpush1.bf16.msra.mxu0 0
    %800 = vmatprep.subr.bf16.mxu0 0
    %801 = vmatpush1.bf16.msra.mxu0 0
    %802 = vmatprep.subr.bf16.mxu0 0
    %803 = vmatpush1.bf16.msra.mxu0 0
    %804 = vmatprep.subr.bf16.mxu0 0
    %805 = vmatpush1.bf16.msra.mxu0 0
    %806 = vmatprep.subr.bf16.mxu0 0
    %807 = vmatpush1.bf16.msra.mxu0 0
    %808 = vmatprep.subr.bf16.mxu0 0
    %809 = vmatpush1.bf16.msra.mxu0 0
    %810 = vmatprep.subr.bf16.mxu0 0
    %811 = vmatpush1.bf16.msra.mxu0 0
    %812 = vmatprep.subr.bf16.mxu0 0
    %813 = vmatpush1.bf16.msra.mxu0 0
    %814 = vmatprep.subr.bf16.mxu0 0
    %815 = vmatpush1.bf16.msra.mxu0 0
    %816 = vmatprep.subr.bf16.mxu0 0
    %817 = vmatpush1.bf16.msra.mxu0 0
    %818 = vmatprep.subr.bf16.mxu0 0
    %819 = vmatpush1.bf16.msra.mxu0 0
    %820 = vmatprep.subr.bf16.mxu0 0
    %821 = vmatpush1.bf16.msra.mxu0 0
    %822 = vmatprep.subr.bf16.mxu0 0
    %823 = vmatpush1.bf16.msra.mxu0 0
    %824 = vmatprep.subr.bf16.mxu0 0
    %825 = vmatpush1.bf16.msra.mxu0 0
    %826 = vmatprep.mubr.bf16.mxu0 0
    %827 = vmatmul.mubr.bf16.gmra.mrb[0].mxu0 %v611
    %v828 = vpop.f32.mrb[0].mxu0
    %v829 = vadd.f32 %v517, %v828
    %v830 = vpop.f32.mrb[0].mxu0
    %v831 = vpop.f32.mrb[0].mxu0
    %v832 = vpop.f32.mrb[0].mxu0
    %833 = vdwg.mxu0
    %v834 = vtanh.pop %v829
    %v835 = vmul.f32 %v658, %v834
    %v836 = vadd.f32 %v748, %v835
    %v837 = vpack.c.bf16 %v836, %v836
    %838 = vmatprep.subr.bf16.mxu0 0
    %839 = vmatpush1.bf16.msra.mxu0 %v551
    %840 = vmatprep.subr.bf16.mxu0 0
    %841 = vmatpush1.bf16.msra.mxu0 %v552
    %842 = vmatprep.subr.bf16.mxu0 0
    %843 = vmatpush1.bf16.msra.mxu0 %v553
    %844 = vmatprep.subr.bf16.mxu0 0
    %845 = vmatpush1.bf16.msra.mxu0 %v554
    %846 = vmatprep.subr.bf16.mxu0 0
    %847 = vmatpush1.bf16.msra.mxu0 %v555
    %848 = vmatprep.subr.bf16.mxu0 0
    %849 = vmatpush1.bf16.msra.mxu0 %v556
    %850 = vmatprep.subr.bf16.mxu0 0
    %851 = vmatpush1.bf16.msra.mxu0 %v557
    %852 = vmatprep.subr.bf16.mxu0 0
    %853 = vmatpush1.bf16.msra.mxu0 %v558
    %854 = vmatprep.subr.bf16.mxu0 0
    %855 = vmatpush1.bf16.msra.mxu0 0
    %856 = vmatprep.subr.bf16.mxu0 0
    %857 = vmatpush1.bf16.msra.mxu0 0
    %858 = vmatprep.subr.bf16.mxu0 0
    %859 = vmatpush1.bf16.msra.mxu0 0
    %860 = vmatprep.subr.bf16.mxu0 0
    %861 = vmatpush1.bf16.msra.mxu0 0
    %862 = vmatprep.subr.bf16.mxu0 0
    %863 = vmatpush1.bf16.msra.mxu0 0
    %864 = vmatprep.subr.bf16.mxu0 0
    %865 = vmatpush1.bf16.msra.mxu0 0
    %866 = vmatprep.subr.bf16.mxu0 0
    %867 = vmatpush1.bf16.msra.mxu0 0
    %868 = vmatprep.subr.bf16.mxu0 0
    %869 = vmatpush1.bf16.msra.mxu0 0
    %870 = vmatprep.mubr.bf16.mxu0 0
    %871 = vmatmul.mubr.bf16.gmra.mrb[0].mxu0 %v837
    %v872 = vpop.f32.mrb[0].mxu0
    %v873 = vadd.f32 0.0, %v872
    %v874 = vpop.f32.mrb[0].mxu0
    %v875 = vpop.f32.mrb[0].mxu0
    %v876 = vpop.f32.mrb[0].mxu0
    %877 = vdwg.mxu0
    %v878 = vpack.c.bf16 %v873, %v873
    %v880 = vsel %vm613, %v878, 0
    %882 = vmatprep.subr.bf16.mxu0 0
    %883 = vmatpush1.bf16.msra.mxu0 %v880
    %884 = vmatprep.subr.bf16.mxu0 0
    %885 = vmatpush1.bf16.msra.mxu0 0
    %886 = vmatprep.subr.bf16.mxu0 0
    %887 = vmatpush1.bf16.msra.mxu0 0
    %888 = vmatprep.subr.bf16.mxu0 0
    %889 = vmatpush1.bf16.msra.mxu0 0
    %890 = vmatprep.subr.bf16.mxu0 0
    %891 = vmatpush1.bf16.msra.mxu0 0
    %892 = vmatprep.subr.bf16.mxu0 0
    %893 = vmatpush1.bf16.msra.mxu0 0
    %894 = vmatprep.subr.bf16.mxu0 0
    %895 = vmatpush1.bf16.msra.mxu0 0
    %896 = vmatprep.subr.bf16.mxu0 0
    %897 = vmatpush1.bf16.msra.mxu0 0
    %898 = vmatprep.subr.bf16.mxu0 0
    %899 = vmatpush1.bf16.msra.mxu0 0
    %900 = vmatprep.subr.bf16.mxu0 0
    %901 = vmatpush1.bf16.msra.mxu0 0
    %902 = vmatprep.subr.bf16.mxu0 0
    %903 = vmatpush1.bf16.msra.mxu0 0
    %904 = vmatprep.subr.bf16.mxu0 0
    %905 = vmatpush1.bf16.msra.mxu0 0
    %906 = vmatprep.subr.bf16.mxu0 0
    %907 = vmatpush1.bf16.msra.mxu0 0
    %908 = vmatprep.subr.bf16.mxu0 0
    %909 = vmatpush1.bf16.msra.mxu0 0
    %910 = vmatprep.subr.bf16.mxu0 0
    %911 = vmatpush1.bf16.msra.mxu0 0
    %912 = vmatprep.subr.bf16.mxu0 0
    %913 = vmatpush1.bf16.msra.mxu0 0
    %914 = vmatprep.mubr.bf16.mxu0 0
    %915 = vmatmul.mubr.bf16.gmra.mrb[0].mxu0 %v611
    %v916 = vpop.f32.mrb[0].mxu0
    %v917 = vadd.f32 %v517, %v916
    %v918 = vpop.f32.mrb[0].mxu0
    %v919 = vpop.f32.mrb[0].mxu0
    %v920 = vpop.f32.mrb[0].mxu0
    %921 = vdwg.mxu0
    %v922 = vtanh.pop %v917
    %v923 = vmul.f32 %v658, %v922
    %v924 = vadd.f32 %v836, %v923
    %v925 = vpack.c.bf16 %v924, %v924
    %926 = vmatprep.subr.bf16.mxu0 0
    %927 = vmatpush1.bf16.msra.mxu0 %v551
    %928 = vmatprep.subr.bf16.mxu0 0
    %929 = vmatpush1.bf16.msra.mxu0 %v552
    %930 = vmatprep.subr.bf16.mxu0 0
    %931 = vmatpush1.bf16.msra.mxu0 %v553
    %932 = vmatprep.subr.bf16.mxu0 0
    %933 = vmatpush1.bf16.msra.mxu0 %v554
    %934 = vmatprep.subr.bf16.mxu0 0
    %935 = vmatpush1.bf16.msra.mxu0 %v555
    %936 = vmatprep.subr.bf16.mxu0 0
    %937 = vmatpush1.bf16.msra.mxu0 %v556
    %938 = vmatprep.subr.bf16.mxu0 0
    %939 = vmatpush1.bf16.msra.mxu0 %v557
    %940 = vmatprep.subr.bf16.mxu0 0
    %941 = vmatpush1.bf16.msra.mxu0 %v558
    %942 = vmatprep.subr.bf16.mxu0 0
    %943 = vmatpush1.bf16.msra.mxu0 0
    %944 = vmatprep.subr.bf16.mxu0 0
    %945 = vmatpush1.bf16.msra.mxu0 0
    %946 = vmatprep.subr.bf16.mxu0 0
    %947 = vmatpush1.bf16.msra.mxu0 0
    %948 = vmatprep.subr.bf16.mxu0 0
    %949 = vmatpush1.bf16.msra.mxu0 0
    %950 = vmatprep.subr.bf16.mxu0 0
    %951 = vmatpush1.bf16.msra.mxu0 0
    %952 = vmatprep.subr.bf16.mxu0 0
    %953 = vmatpush1.bf16.msra.mxu0 0
    %954 = vmatprep.subr.bf16.mxu0 0
    %955 = vmatpush1.bf16.msra.mxu0 0
    %956 = vmatprep.subr.bf16.mxu0 0
    %957 = vmatpush1.bf16.msra.mxu0 0
    %958 = vmatprep.mubr.bf16.mxu0 0
    %959 = vmatmul.mubr.bf16.gmra.mrb[0].mxu0 %v925
    %v960 = vpop.f32.mrb[0].mxu0
    %v961 = vadd.f32 0.0, %v960
    %v962 = vpop.f32.mrb[0].mxu0
    %v963 = vpop.f32.mrb[0].mxu0
    %v964 = vpop.f32.mrb[0].mxu0
    %965 = vdwg.mxu0
    %v966 = vpack.c.bf16 %v961, %v961
    %v968 = vsel %vm613, %v966, 0
    %970 = vmatprep.subr.bf16.mxu0 0
    %971 = vmatpush1.bf16.msra.mxu0 %v968
    %972 = vmatprep.subr.bf16.mxu0 0
    %973 = vmatpush1.bf16.msra.mxu0 0
    %974 = vmatprep.subr.bf16.mxu0 0
    %975 = vmatpush1.bf16.msra.mxu0 0
    %976 = vmatprep.subr.bf16.mxu0 0
    %977 = vmatpush1.bf16.msra.mxu0 0
    %978 = vmatprep.subr.bf16.mxu0 0
    %979 = vmatpush1.bf16.msra.mxu0 0
    %980 = vmatprep.subr.bf16.mxu0 0
    %981 = vmatpush1.bf16.msra.mxu0 0
    %982 = vmatprep.subr.bf16.mxu0 0
    %983 = vmatpush1.bf16.msra.mxu0 0
    %984 = vmatprep.subr.bf16.mxu0 0
    %985 = vmatpush1.bf16.msra.mxu0 0
    %986 = vmatprep.subr.bf16.mxu0 0
    %987 = vmatpush1.bf16.msra.mxu0 0
    %988 = vmatprep.subr.bf16.mxu0 0
    %989 = vmatpush1.bf16.msra.mxu0 0
    %990 = vmatprep.subr.bf16.mxu0 0
    %991 = vmatpush1.bf16.msra.mxu0 0
    %992 = vmatprep.subr.bf16.mxu0 0
    %993 = vmatpush1.bf16.msra.mxu0 0
    %994 = vmatprep.subr.bf16.mxu0 0
    %995 = vmatpush1.bf16.msra.mxu0 0
    %996 = vmatprep.subr.bf16.mxu0 0
    %997 = vmatpush1.bf16.msra.mxu0 0
    %998 = vmatprep.subr.bf16.mxu0 0
    %999 = vmatpush1.bf16.msra.mxu0 0
    %1000 = vmatprep.subr.bf16.mxu0 0
    %1001 = vmatpush1.bf16.msra.mxu0 0
    %1002 = vmatprep.mubr.bf16.mxu0 0
    %1003 = vmatmul.mubr.bf16.gmra.mrb[0].mxu0 %v611
    %v1004 = vpop.f32.mrb[0].mxu0
    %v1005 = vadd.f32 %v517, %v1004
    %v1006 = vpop.f32.mrb[0].mxu0
    %v1007 = vpop.f32.mrb[0].mxu0
    %v1008 = vpop.f32.mrb[0].mxu0
    %1009 = vdwg.mxu0
    %v1010 = vtanh.pop %v1005
    %v1011 = vmul.f32 %v658, %v1010
    %v1012 = vadd.f32 %v924, %v1011
    %v1013 = vpack.c.bf16 %v1012, %v1012
    %1014 = vmatprep.subr.bf16.mxu0 0
    %1015 = vmatpush1.bf16.msra.mxu0 %v551
    %1016 = vmatprep.subr.bf16.mxu0 0
    %1017 = vmatpush1.bf16.msra.mxu0 %v552
    %1018 = vmatprep.subr.bf16.mxu0 0
    %1019 = vmatpush1.bf16.msra.mxu0 %v553
    %1020 = vmatprep.subr.bf16.mxu0 0
    %1021 = vmatpush1.bf16.msra.mxu0 %v554
    %1022 = vmatprep.subr.bf16.mxu0 0
    %1023 = vmatpush1.bf16.msra.mxu0 %v555
    %1024 = vmatprep.subr.bf16.mxu0 0
    %1025 = vmatpush1.bf16.msra.mxu0 %v556
    %1026 = vmatprep.subr.bf16.mxu0 0
    %1027 = vmatpush1.bf16.msra.mxu0 %v557
    %1028 = vmatprep.subr.bf16.mxu0 0
    %1029 = vmatpush1.bf16.msra.mxu0 %v558
    %1030 = vmatprep.subr.bf16.mxu0 0
    %1031 = vmatpush1.bf16.msra.mxu0 0
    %1032 = vmatprep.subr.bf16.mxu0 0
    %1033 = vmatpush1.bf16.msra.mxu0 0
    %1034 = vmatprep.subr.bf16.mxu0 0
    %1035 = vmatpush1.bf16.msra.mxu0 0
    %1036 = vmatprep.subr.bf16.mxu0 0
    %1037 = vmatpush1.bf16.msra.mxu0 0
    %1038 = vmatprep.subr.bf16.mxu0 0
    %1039 = vmatpush1.bf16.msra.mxu0 0
    %1040 = vmatprep.subr.bf16.mxu0 0
    %1041 = vmatpush1.bf16.msra.mxu0 0
    %1042 = vmatprep.subr.bf16.mxu0 0
    %1043 = vmatpush1.bf16.msra.mxu0 0
    %1044 = vmatprep.subr.bf16.mxu0 0
    %1045 = vmatpush1.bf16.msra.mxu0 0
    %1046 = vmatprep.mubr.bf16.mxu0 0
    %1047 = vmatmul.mubr.bf16.gmra.mrb[0].mxu0 %v1013
    %v1048 = vpop.f32.mrb[0].mxu0
    %v1049 = vadd.f32 0.0, %v1048
    %v1050 = vpop.f32.mrb[0].mxu0
    %v1051 = vpop.f32.mrb[0].mxu0
    %v1052 = vpop.f32.mrb[0].mxu0
    %1053 = vdwg.mxu0
    %v1054 = vpack.c.bf16 %v1049, %v1049
    %v1056 = vsel %vm613, %v1054, 0
    %1058 = vmatprep.subr.bf16.mxu0 0
    %1059 = vmatpush1.bf16.msra.mxu0 %v1056
    %1060 = vmatprep.subr.bf16.mxu0 0
    %1061 = vmatpush1.bf16.msra.mxu0 0
    %1062 = vmatprep.subr.bf16.mxu0 0
    %1063 = vmatpush1.bf16.msra.mxu0 0
    %1064 = vmatprep.subr.bf16.mxu0 0
    %1065 = vmatpush1.bf16.msra.mxu0 0
    %1066 = vmatprep.subr.bf16.mxu0 0
    %1067 = vmatpush1.bf16.msra.mxu0 0
    %1068 = vmatprep.subr.bf16.mxu0 0
    %1069 = vmatpush1.bf16.msra.mxu0 0
    %1070 = vmatprep.subr.bf16.mxu0 0
    %1071 = vmatpush1.bf16.msra.mxu0 0
    %1072 = vmatprep.subr.bf16.mxu0 0
    %1073 = vmatpush1.bf16.msra.mxu0 0
    %1074 = vmatprep.subr.bf16.mxu0 0
    %1075 = vmatpush1.bf16.msra.mxu0 0
    %1076 = vmatprep.subr.bf16.mxu0 0
    %1077 = vmatpush1.bf16.msra.mxu0 0
    %1078 = vmatprep.subr.bf16.mxu0 0
    %1079 = vmatpush1.bf16.msra.mxu0 0
    %1080 = vmatprep.subr.bf16.mxu0 0
    %1081 = vmatpush1.bf16.msra.mxu0 0
    %1082 = vmatprep.subr.bf16.mxu0 0
    %1083 = vmatpush1.bf16.msra.mxu0 0
    %1084 = vmatprep.subr.bf16.mxu0 0
    %1085 = vmatpush1.bf16.msra.mxu0 0
    %1086 = vmatprep.subr.bf16.mxu0 0
    %1087 = vmatpush1.bf16.msra.mxu0 0
    %1088 = vmatprep.subr.bf16.mxu0 0
    %1089 = vmatpush1.bf16.msra.mxu0 0
    %1090 = vmatprep.mubr.bf16.mxu0 0
    %1091 = vmatmul.mubr.bf16.gmra.mrb[0].mxu0 %v611
    %v1092 = vpop.f32.mrb[0].mxu0
    %v1093 = vadd.f32 %v517, %v1092
    %v1094 = vpop.f32.mrb[0].mxu0
    %v1095 = vpop.f32.mrb[0].mxu0
    %v1096 = vpop.f32.mrb[0].mxu0
    %1097 = vdwg.mxu0
    %v1098 = vtanh.pop %v1093
    %v1099 = vmul.f32 %v658, %v1098
    %v1100 = vadd.f32 %v1012, %v1099
    %v1101 = vpack.c.bf16 %v1100, %v1100
    %1102 = vmatprep.subr.bf16.mxu0 0
    %1103 = vmatpush1.bf16.msra.mxu0 %v551
    %1104 = vmatprep.subr.bf16.mxu0 0
    %1105 = vmatpush1.bf16.msra.mxu0 %v552
    %1106 = vmatprep.subr.bf16.mxu0 0
    %1107 = vmatpush1.bf16.msra.mxu0 %v553
    %1108 = vmatprep.subr.bf16.mxu0 0
    %1109 = vmatpush1.bf16.msra.mxu0 %v554
    %1110 = vmatprep.subr.bf16.mxu0 0
    %1111 = vmatpush1.bf16.msra.mxu0 %v555
    %1112 = vmatprep.subr.bf16.mxu0 0
    %1113 = vmatpush1.bf16.msra.mxu0 %v556
    %1114 = vmatprep.subr.bf16.mxu0 0
    %1115 = vmatpush1.bf16.msra.mxu0 %v557
    %1116 = vmatprep.subr.bf16.mxu0 0
    %1117 = vmatpush1.bf16.msra.mxu0 %v558
    %1118 = vmatprep.subr.bf16.mxu0 0
    %1119 = vmatpush1.bf16.msra.mxu0 0
    %1120 = vmatprep.subr.bf16.mxu0 0
    %1121 = vmatpush1.bf16.msra.mxu0 0
    %1122 = vmatprep.subr.bf16.mxu0 0
    %1123 = vmatpush1.bf16.msra.mxu0 0
    %1124 = vmatprep.subr.bf16.mxu0 0
    %1125 = vmatpush1.bf16.msra.mxu0 0
    %1126 = vmatprep.subr.bf16.mxu0 0
    %1127 = vmatpush1.bf16.msra.mxu0 0
    %1128 = vmatprep.subr.bf16.mxu0 0
    %1129 = vmatpush1.bf16.msra.mxu0 0
    %1130 = vmatprep.subr.bf16.mxu0 0
    %1131 = vmatpush1.bf16.msra.mxu0 0
    %1132 = vmatprep.subr.bf16.mxu0 0
    %1133 = vmatpush1.bf16.msra.mxu0 0
    %1134 = vmatprep.mubr.bf16.mxu0 0
    %1135 = vmatmul.mubr.bf16.gmra.mrb[0].mxu0 %v1101
    %v1136 = vpop.f32.mrb[0].mxu0
    %v1137 = vadd.f32 0.0, %v1136
    %v1138 = vpop.f32.mrb[0].mxu0
    %v1139 = vpop.f32.mrb[0].mxu0
    %v1140 = vpop.f32.mrb[0].mxu0
    %1141 = vdwg.mxu0
    %v1142 = vpack.c.bf16 %v1137, %v1137
    %v1144 = vsel %vm613, %v1142, 0
    %1146 = vmatprep.subr.bf16.mxu0 0
    %1147 = vmatpush1.bf16.msra.mxu0 %v1144
    %1148 = vmatprep.subr.bf16.mxu0 0
    %1149 = vmatpush1.bf16.msra.mxu0 0
    %1150 = vmatprep.subr.bf16.mxu0 0
    %1151 = vmatpush1.bf16.msra.mxu0 0
    %1152 = vmatprep.subr.bf16.mxu0 0
    %1153 = vmatpush1.bf16.msra.mxu0 0
    %1154 = vmatprep.subr.bf16.mxu0 0
    %1155 = vmatpush1.bf16.msra.mxu0 0
    %1156 = vmatprep.subr.bf16.mxu0 0
    %1157 = vmatpush1.bf16.msra.mxu0 0
    %1158 = vmatprep.subr.bf16.mxu0 0
    %1159 = vmatpush1.bf16.msra.mxu0 0
    %1160 = vmatprep.subr.bf16.mxu0 0
    %1161 = vmatpush1.bf16.msra.mxu0 0
    %1162 = vmatprep.subr.bf16.mxu0 0
    %1163 = vmatpush1.bf16.msra.mxu0 0
    %1164 = vmatprep.subr.bf16.mxu0 0
    %1165 = vmatpush1.bf16.msra.mxu0 0
    %1166 = vmatprep.subr.bf16.mxu0 0
    %1167 = vmatpush1.bf16.msra.mxu0 0
    %1168 = vmatprep.subr.bf16.mxu0 0
    %1169 = vmatpush1.bf16.msra.mxu0 0
    %1170 = vmatprep.subr.bf16.mxu0 0
    %1171 = vmatpush1.bf16.msra.mxu0 0
    %1172 = vmatprep.subr.bf16.mxu0 0
    %1173 = vmatpush1.bf16.msra.mxu0 0
    %1174 = vmatprep.subr.bf16.mxu0 0
    %1175 = vmatpush1.bf16.msra.mxu0 0
    %1176 = vmatprep.subr.bf16.mxu0 0
    %1177 = vmatpush1.bf16.msra.mxu0 0
    %1178 = vmatprep.mubr.bf16.mxu0 0
    %1179 = vmatmul.mubr.bf16.gmra.mrb[0].mxu0 %v611
    %v1180 = vpop.f32.mrb[0].mxu0
    %v1181 = vadd.f32 %v517, %v1180
    %v1182 = vpop.f32.mrb[0].mxu0
    %v1183 = vpop.f32.mrb[0].mxu0
    %v1184 = vpop.f32.mrb[0].mxu0
    %1185 = vdwg.mxu0
    %v1186 = vtanh.pop %v1181
    %v1187 = vmul.f32 %v658, %v1186
    %v1188 = vadd.f32 %v1100, %v1187
    %v1189 = vpack.c.bf16 %v1188, %v1188
    %1190 = vmatprep.subr.bf16.mxu0 0
    %1191 = vmatpush1.bf16.msra.mxu0 %v551
    %1192 = vmatprep.subr.bf16.mxu0 0
    %1193 = vmatpush1.bf16.msra.mxu0 %v552
    %1194 = vmatprep.subr.bf16.mxu0 0
    %1195 = vmatpush1.bf16.msra.mxu0 %v553
    %1196 = vmatprep.subr.bf16.mxu0 0
    %1197 = vmatpush1.bf16.msra.mxu0 %v554
    %1198 = vmatprep.subr.bf16.mxu0 0
    %1199 = vmatpush1.bf16.msra.mxu0 %v555
    %1200 = vmatprep.subr.bf16.mxu0 0
    %1201 = vmatpush1.bf16.msra.mxu0 %v556
    %1202 = vmatprep.subr.bf16.mxu0 0
    %1203 = vmatpush1.bf16.msra.mxu0 %v557
    %1204 = vmatprep.subr.bf16.mxu0 0
    %1205 = vmatpush1.bf16.msra.mxu0 %v558
    %1206 = vmatprep.subr.bf16.mxu0 0
    %1207 = vmatpush1.bf16.msra.mxu0 0
    %1208 = vmatprep.subr.bf16.mxu0 0
    %1209 = vmatpush1.bf16.msra.mxu0 0
    %1210 = vmatprep.subr.bf16.mxu0 0
    %1211 = vmatpush1.bf16.msra.mxu0 0
    %1212 = vmatprep.subr.bf16.mxu0 0
    %1213 = vmatpush1.bf16.msra.mxu0 0
    %1214 = vmatprep.subr.bf16.mxu0 0
    %1215 = vmatpush1.bf16.msra.mxu0 0
    %1216 = vmatprep.subr.bf16.mxu0 0
    %1217 = vmatpush1.bf16.msra.mxu0 0
    %1218 = vmatprep.subr.bf16.mxu0 0
    %1219 = vmatpush1.bf16.msra.mxu0 0
    %1220 = vmatprep.subr.bf16.mxu0 0
    %1221 = vmatpush1.bf16.msra.mxu0 0
    %1222 = vmatprep.mubr.bf16.mxu0 0
    %1223 = vmatmul.mubr.bf16.gmra.mrb[0].mxu0 %v1189
    %v1224 = vpop.f32.mrb[0].mxu0
    %v1225 = vadd.f32 0.0, %v1224
    %v1226 = vpop.f32.mrb[0].mxu0
    %v1227 = vpop.f32.mrb[0].mxu0
    %v1228 = vpop.f32.mrb[0].mxu0
    %1229 = vdwg.mxu0
    %v1230 = vpack.c.bf16 %v1225, %v1225
    %v1232 = vsel %vm613, %v1230, 0
    %1234 = vmatprep.subr.bf16.mxu0 0
    %1235 = vmatpush1.bf16.msra.mxu0 %v1232
    %1236 = vmatprep.subr.bf16.mxu0 0
    %1237 = vmatpush1.bf16.msra.mxu0 0
    %1238 = vmatprep.subr.bf16.mxu0 0
    %1239 = vmatpush1.bf16.msra.mxu0 0
    %1240 = vmatprep.subr.bf16.mxu0 0
    %1241 = vmatpush1.bf16.msra.mxu0 0
    %1242 = vmatprep.subr.bf16.mxu0 0
    %1243 = vmatpush1.bf16.msra.mxu0 0
    %1244 = vmatprep.subr.bf16.mxu0 0
    %1245 = vmatpush1.bf16.msra.mxu0 0
    %1246 = vmatprep.subr.bf16.mxu0 0
    %1247 = vmatpush1.bf16.msra.mxu0 0
    %1248 = vmatprep.subr.bf16.mxu0 0
    %1249 = vmatpush1.bf16.msra.mxu0 0
    %1250 = vmatprep.subr.bf16.mxu0 0
    %1251 = vmatpush1.bf16.msra.mxu0 0
    %1252 = vmatprep.subr.bf16.mxu0 0
    %1253 = vmatpush1.bf16.msra.mxu0 0
    %1254 = vmatprep.subr.bf16.mxu0 0
    %1255 = vmatpush1.bf16.msra.mxu0 0
    %1256 = vmatprep.subr.bf16.mxu0 0
    %1257 = vmatpush1.bf16.msra.mxu0 0
    %1258 = vmatprep.subr.bf16.mxu0 0
    %1259 = vmatpush1.bf16.msra.mxu0 0
    %1260 = vmatprep.subr.bf16.mxu0 0
    %1261 = vmatpush1.bf16.msra.mxu0 0
    %1262 = vmatprep.subr.bf16.mxu0 0
    %1263 = vmatpush1.bf16.msra.mxu0 0
    %1264 = vmatprep.subr.bf16.mxu0 0
    %1265 = vmatpush1.bf16.msra.mxu0 0
    %1266 = vmatprep.mubr.bf16.mxu0 0
    %1267 = vmatmul.mubr.bf16.gmra.mrb[0].mxu0 %v611
    %v1268 = vpop.f32.mrb[0].mxu0
    %v1269 = vadd.f32 %v517, %v1268
    %v1270 = vpop.f32.mrb[0].mxu0
    %v1271 = vpop.f32.mrb[0].mxu0
    %v1272 = vpop.f32.mrb[0].mxu0
    %1273 = vdwg.mxu0
    %v1274 = vtanh.pop %v1269
    %v1275 = vmul.f32 %v658, %v1274
    %v1276 = vadd.f32 %v1188, %v1275
    %v1277 = vpack.c.bf16 %v139, %v138
    %v1278 = vpack.c.bf16 %v141, %v140
    %v1279 = vpack.c.bf16 %v1276, %v507
    %v1281 = vsel %vm468, %v1277, 0
    %v1284 = vsel %vm468, %v1278, 0
    %1286 = vmatprep.subr.bf16.mxu0 0
    %1287 = vmatpush1.bf16.msra.mxu0 %v1279
    %1288 = vmatprep.subr.bf16.mxu0 0
    %1289 = vmatpush1.bf16.msra.mxu0 0
    %1290 = vmatprep.subr.bf16.mxu0 0
    %1291 = vmatpush1.bf16.msra.mxu0 0
    %1292 = vmatprep.subr.bf16.mxu0 0
    %1293 = vmatpush1.bf16.msra.mxu0 0
    %1294 = vmatprep.subr.bf16.mxu0 0
    %1295 = vmatpush1.bf16.msra.mxu0 0
    %1296 = vmatprep.subr.bf16.mxu0 0
    %1297 = vmatpush1.bf16.msra.mxu0 0
    %1298 = vmatprep.subr.bf16.mxu0 0
    %1299 = vmatpush1.bf16.msra.mxu0 0
    %1300 = vmatprep.subr.bf16.mxu0 0
    %1301 = vmatpush1.bf16.msra.mxu0 0
    %1302 = vmatprep.subr.bf16.mxu0 0
    %1303 = vmatpush1.bf16.msra.mxu0 0
    %1304 = vmatprep.subr.bf16.mxu0 0
    %1305 = vmatpush1.bf16.msra.mxu0 0
    %1306 = vmatprep.subr.bf16.mxu0 0
    %1307 = vmatpush1.bf16.msra.mxu0 0
    %1308 = vmatprep.subr.bf16.mxu0 0
    %1309 = vmatpush1.bf16.msra.mxu0 0
    %1310 = vmatprep.subr.bf16.mxu0 0
    %1311 = vmatpush1.bf16.msra.mxu0 0
    %1312 = vmatprep.subr.bf16.mxu0 0
    %1313 = vmatpush1.bf16.msra.mxu0 0
    %1314 = vmatprep.subr.bf16.mxu0 0
    %1315 = vmatpush1.bf16.msra.mxu0 0
    %1316 = vmatprep.subr.bf16.mxu0 0
    %1317 = vmatpush1.bf16.msra.mxu0 0
    %1318 = vmatprep.mubr.bf16.mxu0 0
    %1319 = vmatmul.mubr.bf16.gmra.mrb[0].mxu0 %v1281
    %v1320 = vpop.f32.mrb[0].mxu0
    %v1321 = vadd.f32 0.0, %v1320
    %v1322 = vpop.f32.mrb[0].mxu0
    %v1323 = vpop.f32.mrb[0].mxu0
    %v1324 = vadd.f32 0.0, %v1323
    %v1325 = vpop.f32.mrb[0].mxu0
    %1326 = vmatprep.mubr.bf16.mxu0 0
    %1327 = vmatmul.mubr.bf16.gmra.mrb[0].mxu0 %v1284
    %v1328 = vpop.f32.mrb[0].mxu0
    %v1329 = vadd.f32 0.0, %v1328
    %v1330 = vpop.f32.mrb[0].mxu0
    %v1331 = vpop.f32.mrb[0].mxu0
    %v1332 = vadd.f32 0.0, %v1331
    %v1333 = vpop.f32.mrb[0].mxu0
    %1334 = vdwg.mxu0
    %v1335 = vpack.c.bf16 %v1324, %v1321
    %v1336 = vpack.c.bf16 %v1332, %v1329
    %v1353 = vunpack.c.l.b16 %v79
    %v1354 = vunpack.c.l.b16 %v80
    %v1355 = vunpack.c.l.b16 %v81
    %v1356 = vunpack.c.l.b16 %v82
    %v1357 = vunpack.c.l.b16 %v83
    %v1358 = vunpack.c.l.b16 %v84
    %v1359 = vunpack.c.l.b16 %v85
    %v1360 = vunpack.c.l.b16 %v86
    %v1361 = vunpack.c.l.b16 %v87
    %v1362 = vunpack.c.l.b16 %v88
    %v1363 = vunpack.c.l.b16 %v89
    %v1364 = vunpack.c.l.b16 %v90
    %v1365 = vunpack.c.l.b16 %v91
    %v1366 = vunpack.c.l.b16 %v92
    %v1367 = vunpack.c.l.b16 %v93
    %v1368 = vunpack.c.l.b16 %v94
    %v1369 = vpack.c.b16 %v1354, %v1353
    %v1370 = vpack.c.b16 %v1356, %v1355
    %v1371 = vpack.c.b16 %v1358, %v1357
    %v1372 = vpack.c.b16 %v1360, %v1359
    %v1373 = vpack.c.b16 %v1362, %v1361
    %v1374 = vpack.c.b16 %v1364, %v1363
    %v1375 = vpack.c.b16 %v1366, %v1365
    %v1376 = vpack.c.b16 %v1368, %v1367
    %1385 = vmatprep.subr.bf16.mxu0 0
    %1386 = vmatpush1.bf16.msra.mxu0 %v1369
    %1387 = vmatprep.subr.bf16.mxu0 0
    %1388 = vmatpush1.bf16.msra.mxu0 %v1370
    %1389 = vmatprep.subr.bf16.mxu0 0
    %1390 = vmatpush1.bf16.msra.mxu0 %v1371
    %1391 = vmatprep.subr.bf16.mxu0 0
    %1392 = vmatpush1.bf16.msra.mxu0 %v1372
    %1393 = vmatprep.subr.bf16.mxu0 0
    %1394 = vmatpush1.bf16.msra.mxu0 %v1373
    %1395 = vmatprep.subr.bf16.mxu0 0
    %1396 = vmatpush1.bf16.msra.mxu0 %v1374
    %1397 = vmatprep.subr.bf16.mxu0 0
    %1398 = vmatpush1.bf16.msra.mxu0 %v1375
    %1399 = vmatprep.subr.bf16.mxu0 0
    %1400 = vmatpush1.bf16.msra.mxu0 %v1376
    %1401 = vmatprep.subr.bf16.mxu0 0
    %1402 = vmatpush1.bf16.msra.mxu0 0
    %1403 = vmatprep.subr.bf16.mxu0 0
    %1404 = vmatpush1.bf16.msra.mxu0 0
    %1405 = vmatprep.subr.bf16.mxu0 0
    %1406 = vmatpush1.bf16.msra.mxu0 0
    %1407 = vmatprep.subr.bf16.mxu0 0
    %1408 = vmatpush1.bf16.msra.mxu0 0
    %1409 = vmatprep.subr.bf16.mxu0 0
    %1410 = vmatpush1.bf16.msra.mxu0 0
    %1411 = vmatprep.subr.bf16.mxu0 0
    %1412 = vmatpush1.bf16.msra.mxu0 0
    %1413 = vmatprep.subr.bf16.mxu0 0
    %1414 = vmatpush1.bf16.msra.mxu0 0
    %1415 = vmatprep.subr.bf16.mxu0 0
    %1416 = vmatpush1.bf16.msra.mxu0 0
    %1417 = vmatprep.mubr.bf16.mxu0 0
    %1418 = vmatmul.mubr.bf16.gmra.mrb[0].mxu0 %v1335
    %v1419 = vpop.f32.mrb[0].mxu0
    %v1420 = vadd.f32 0.0, %v1419
    %v1421 = vpop.f32.mrb[0].mxu0
    %v1422 = vpop.f32.mrb[0].mxu0
    %v1423 = vadd.f32 0.0, %v1422
    %v1424 = vpop.f32.mrb[0].mxu0
    %1425 = vmatprep.mubr.bf16.mxu0 0
    %1426 = vmatmul.mubr.bf16.gmra.mrb[0].mxu0 %v1336
    %v1427 = vpop.f32.mrb[0].mxu0
    %v1428 = vadd.f32 0.0, %v1427
    %v1429 = vpop.f32.mrb[0].mxu0
    %v1430 = vpop.f32.mrb[0].mxu0
    %v1431 = vadd.f32 0.0, %v1430
    %v1432 = vpop.f32.mrb[0].mxu0
    %1433 = vdwg.mxu0
    %v1434 = vpack.c.bf16 %v1423, %v1420
    %v1435 = vpack.c.bf16 %v1431, %v1428
    %v1436 = vlaneseq
    %v1437 = vshrl.u32 %v1436, 7
    %v1438 = vsub.s32 0, %v1437
    %v1439 = vrot.slane %v129, %v1438
    %1440 = vmatprep.subr.bf16.mxu0 0
    %1441 = vmatpush1.bf16.msra.mxu0 %v1434
    %1442 = vmatprep.subr.bf16.mxu0 0
    %1443 = vmatpush1.bf16.msra.mxu0 %v1435
    %1444 = vmatprep.subr.bf16.mxu0 0
    %1445 = vmatpush1.bf16.msra.mxu0 0
    %1446 = vmatprep.subr.bf16.mxu0 0
    %1447 = vmatpush1.bf16.msra.mxu0 0
    %1448 = vmatprep.subr.bf16.mxu0 0
    %1449 = vmatpush1.bf16.msra.mxu0 0
    %1450 = vmatprep.subr.bf16.mxu0 0
    %1451 = vmatpush1.bf16.msra.mxu0 0
    %1452 = vmatprep.subr.bf16.mxu0 0
    %1453 = vmatpush1.bf16.msra.mxu0 0
    %1454 = vmatprep.subr.bf16.mxu0 0
    %1455 = vmatpush1.bf16.msra.mxu0 0
    %1456 = vmatprep.subr.bf16.mxu0 0
    %1457 = vmatpush1.bf16.msra.mxu0 0
    %1458 = vmatprep.subr.bf16.mxu0 0
    %1459 = vmatpush1.bf16.msra.mxu0 0
    %1460 = vmatprep.subr.bf16.mxu0 0
    %1461 = vmatpush1.bf16.msra.mxu0 0
    %1462 = vmatprep.subr.bf16.mxu0 0
    %1463 = vmatpush1.bf16.msra.mxu0 0
    %1464 = vmatprep.subr.bf16.mxu0 0
    %1465 = vmatpush1.bf16.msra.mxu0 0
    %1466 = vmatprep.subr.bf16.mxu0 0
    %1467 = vmatpush1.bf16.msra.mxu0 0
    %1468 = vmatprep.subr.bf16.mxu0 0
    %1469 = vmatpush1.bf16.msra.mxu0 0
    %1470 = vmatprep.subr.bf16.mxu0 0
    %1471 = vmatpush1.bf16.msra.mxu0 0
    %1472 = vmatprep.mubr.bf16.mxu0 0
    %1473 = vmatmul.mubr.bf16.gmra.mrb[0].mxu0 %v267
    %v1474 = vpop.f32.mrb[0].mxu0
    %v1475 = vadd.f32 %v1439, %v1474
    %v1476 = vpop.f32.mrb[0].mxu0
    %v1477 = vpop.f32.mrb[0].mxu0
    %v1478 = vadd.f32 %v1439, %v1477
    %v1479 = vpop.f32.mrb[0].mxu0
    %1480 = vmatprep.mubr.bf16.mxu0 0
    %1481 = vmatmul.mubr.bf16.gmra.mrb[0].mxu0 %v270
    %v1482 = vpop.f32.mrb[0].mxu0
    %v1483 = vadd.f32 %v1439, %v1482
    %v1484 = vpop.f32.mrb[0].mxu0
    %v1485 = vpop.f32.mrb[0].mxu0
    %v1486 = vadd.f32 %v1439, %v1485
    %v1487 = vpop.f32.mrb[0].mxu0
    %1488 = vdwg.mxu0
    %v1489 = vmax.f32 %v1475, 0.0
    %v1490 = vmax.f32 %v1478, 0.0
    %v1491 = vmax.f32 %v1483, 0.0
    %v1492 = vmax.f32 %v1486, 0.0
    %v1493 = vpack.c.bf16 %v1490, %v1489
    %v1494 = vpack.c.bf16 %v1492, %v1491
    %v1511 = vunpack.c.l.b16 %v95
    %v1512 = vunpack.c.l.b16 %v96
    %v1513 = vunpack.c.l.b16 %v97
    %v1514 = vunpack.c.l.b16 %v98
    %v1515 = vunpack.c.l.b16 %v99
    %v1516 = vunpack.c.l.b16 %v100
    %v1517 = vunpack.c.l.b16 %v101
    %v1518 = vunpack.c.l.b16 %v102
    %v1519 = vunpack.c.l.b16 %v103
    %v1520 = vunpack.c.l.b16 %v104
    %v1521 = vunpack.c.l.b16 %v105
    %v1522 = vunpack.c.l.b16 %v106
    %v1523 = vunpack.c.l.b16 %v107
    %v1524 = vunpack.c.l.b16 %v108
    %v1525 = vunpack.c.l.b16 %v109
    %v1526 = vunpack.c.l.b16 %v110
    %v1527 = vpack.c.b16 %v1512, %v1511
    %v1528 = vpack.c.b16 %v1514, %v1513
    %v1529 = vpack.c.b16 %v1516, %v1515
    %v1530 = vpack.c.b16 %v1518, %v1517
    %v1531 = vpack.c.b16 %v1520, %v1519
    %v1532 = vpack.c.b16 %v1522, %v1521
    %v1533 = vpack.c.b16 %v1524, %v1523
    %v1534 = vpack.c.b16 %v1526, %v1525
    %1543 = vmatprep.subr.bf16.mxu0 0
    %1544 = vmatpush1.bf16.msra.mxu0 %v1527
    %1545 = vmatprep.subr.bf16.mxu0 0
    %1546 = vmatpush1.bf16.msra.mxu0 %v1528
    %1547 = vmatprep.subr.bf16.mxu0 0
    %1548 = vmatpush1.bf16.msra.mxu0 %v1529
    %1549 = vmatprep.subr.bf16.mxu0 0
    %1550 = vmatpush1.bf16.msra.mxu0 %v1530
    %1551 = vmatprep.subr.bf16.mxu0 0
    %1552 = vmatpush1.bf16.msra.mxu0 %v1531
    %1553 = vmatprep.subr.bf16.mxu0 0
    %1554 = vmatpush1.bf16.msra.mxu0 %v1532
    %1555 = vmatprep.subr.bf16.mxu0 0
    %1556 = vmatpush1.bf16.msra.mxu0 %v1533
    %1557 = vmatprep.subr.bf16.mxu0 0
    %1558 = vmatpush1.bf16.msra.mxu0 %v1534
    %1559 = vmatprep.subr.bf16.mxu0 0
    %1560 = vmatpush1.bf16.msra.mxu0 0
    %1561 = vmatprep.subr.bf16.mxu0 0
    %1562 = vmatpush1.bf16.msra.mxu0 0
    %1563 = vmatprep.subr.bf16.mxu0 0
    %1564 = vmatpush1.bf16.msra.mxu0 0
    %1565 = vmatprep.subr.bf16.mxu0 0
    %1566 = vmatpush1.bf16.msra.mxu0 0
    %1567 = vmatprep.subr.bf16.mxu0 0
    %1568 = vmatpush1.bf16.msra.mxu0 0
    %1569 = vmatprep.subr.bf16.mxu0 0
    %1570 = vmatpush1.bf16.msra.mxu0 0
    %1571 = vmatprep.subr.bf16.mxu0 0
    %1572 = vmatpush1.bf16.msra.mxu0 0
    %1573 = vmatprep.subr.bf16.mxu0 0
    %1574 = vmatpush1.bf16.msra.mxu0 0
    %1575 = vmatprep.mubr.bf16.mxu0 0
    %1576 = vmatmul.mubr.bf16.gmra.mrb[0].mxu0 %v1493
    %v1577 = vpop.f32.mrb[0].mxu0
    %v1578 = vadd.f32 0.0, %v1577
    %v1579 = vpop.f32.mrb[0].mxu0
    %v1580 = vpop.f32.mrb[0].mxu0
    %v1581 = vadd.f32 0.0, %v1580
    %v1582 = vpop.f32.mrb[0].mxu0
    %1583 = vmatprep.mubr.bf16.mxu0 0
    %1584 = vmatmul.mubr.bf16.gmra.mrb[0].mxu0 %v1494
    %v1585 = vpop.f32.mrb[0].mxu0
    %v1586 = vadd.f32 0.0, %v1585
    %v1587 = vpop.f32.mrb[0].mxu0
    %v1588 = vpop.f32.mrb[0].mxu0
    %v1589 = vadd.f32 0.0, %v1588
    %v1590 = vpop.f32.mrb[0].mxu0
    %1591 = vdwg.mxu0
    %v1592 = vpack.c.bf16 %v1581, %v1578
    %v1593 = vpack.c.bf16 %v1589, %v1586
    %v1594 = vlaneseq
    %v1595 = vshrl.u32 %v1594, 7
    %v1596 = vsub.s32 0, %v1595
    %v1597 = vrot.slane %v130, %v1596
    %1598 = vmatprep.subr.bf16.mxu0 0
    %1599 = vmatpush1.bf16.msra.mxu0 %v1592
    %1600 = vmatprep.subr.bf16.mxu0 0
    %1601 = vmatpush1.bf16.msra.mxu0 %v1593
    %1602 = vmatprep.subr.bf16.mxu0 0
    %1603 = vmatpush1.bf16.msra.mxu0 0
    %1604 = vmatprep.subr.bf16.mxu0 0
    %1605 = vmatpush1.bf16.msra.mxu0 0
    %1606 = vmatprep.subr.bf16.mxu0 0
    %1607 = vmatpush1.bf16.msra.mxu0 0
    %1608 = vmatprep.subr.bf16.mxu0 0
    %1609 = vmatpush1.bf16.msra.mxu0 0
    %1610 = vmatprep.subr.bf16.mxu0 0
    %1611 = vmatpush1.bf16.msra.mxu0 0
    %1612 = vmatprep.subr.bf16.mxu0 0
    %1613 = vmatpush1.bf16.msra.mxu0 0
    %1614 = vmatprep.subr.bf16.mxu0 0
    %1615 = vmatpush1.bf16.msra.mxu0 0
    %1616 = vmatprep.subr.bf16.mxu0 0
    %1617 = vmatpush1.bf16.msra.mxu0 0
    %1618 = vmatprep.subr.bf16.mxu0 0
    %1619 = vmatpush1.bf16.msra.mxu0 0
    %1620 = vmatprep.subr.bf16.mxu0 0
    %1621 = vmatpush1.bf16.msra.mxu0 0
    %1622 = vmatprep.subr.bf16.mxu0 0
    %1623 = vmatpush1.bf16.msra.mxu0 0
    %1624 = vmatprep.subr.bf16.mxu0 0
    %1625 = vmatpush1.bf16.msra.mxu0 0
    %1626 = vmatprep.subr.bf16.mxu0 0
    %1627 = vmatpush1.bf16.msra.mxu0 0
    %1628 = vmatprep.subr.bf16.mxu0 0
    %1629 = vmatpush1.bf16.msra.mxu0 0
    %1630 = vmatprep.mubr.bf16.mxu0 0
    %1631 = vmatmul.mubr.bf16.gmra.mrb[0].mxu0 %v267
    %v1632 = vpop.f32.mrb[0].mxu0
    %v1633 = vadd.f32 %v1597, %v1632
    %v1634 = vpop.f32.mrb[0].mxu0
    %v1635 = vpop.f32.mrb[0].mxu0
    %v1636 = vadd.f32 %v1597, %v1635
    %v1637 = vpop.f32.mrb[0].mxu0
    %1638 = vmatprep.mubr.bf16.mxu0 0
    %1639 = vmatmul.mubr.bf16.gmra.mrb[0].mxu0 %v270
    %v1640 = vpop.f32.mrb[0].mxu0
    %v1641 = vadd.f32 %v1597, %v1640
    %v1642 = vpop.f32.mrb[0].mxu0
    %v1643 = vpop.f32.mrb[0].mxu0
    %v1644 = vadd.f32 %v1597, %v1643
    %v1645 = vpop.f32.mrb[0].mxu0
    %1646 = vdwg.mxu0
    %1647 = vst [vmem:[%s8] sm:$0xff] %v1633
    %1648 = vst [vmem:[%s8 + $0x8] sm:$0xff] %v1636
    %1649 = vst [vmem:[%s8 + $0x10] sm:$0xff] %v1641
    %1650 = vst [vmem:[%s8 + $0x18] sm:$0xff] %v1644
    %1651 = vst [vmem:[%s9] sm:$0xff] %v507
    %1652 = vst [vmem:[%s9 + $0x8] sm:$0xff] %v1276
    %1653 = vst [vmem:[%s9 + $0x10] sm:$0xff] %v510
    // Predicated region
    $region38: #{_forward_arrays.1} parent=1 // pred_check
      _
    $region39: #{_forward_arrays.1} parent=1 // pred_check_branch
      %1655 = sbr.rel (0) target = $region41
    $region40: #{_forward_arrays.1} parent=1 // pred_region
      _
    $region41: #{_forward_arrays.1} parent=1 // pred_fallthru
      _
    // Predicated region
    $region42: #{_forward_arrays.1} parent=1 // pred_check
      _
    $region43: #{_forward_arrays.1} parent=1 // pred_check_branch
      %1657 = sbr.rel (0) target = $region45
    $region44: #{_forward_arrays.1} parent=1 // pred_region
      _
    $region45: #{_forward_arrays.1} parent=1 // pred_fallthru
      _
    // Predicated region
    $region46: #{_forward_arrays.1} parent=1 // pred_check
      _
    $region47: #{_forward_arrays.1} parent=1 // pred_check_branch
      %1659 = sbr.rel (0) target = $region49
    $region48: #{_forward_arrays.1} parent=1 // pred_region
      _
    $region49: #{_forward_arrays.1} parent=1 // pred_fallthru
      _
    // Predicated region
    $region50: #{_forward_arrays.1} parent=1 // pred_check
      _
    $region51: #{_forward_arrays.1} parent=1 // pred_check_branch
      %1661 = sbr.rel (0) target = $region53
    $region52: #{_forward_arrays.1} parent=1 // pred_region
      _
    $region53: #{_forward_arrays.1} parent=1 // pred_fallthru
      _
    %1662 = vsyncpa [#allocation4], 1

</llo_original>
